<compile_context>
chip_gen: v6e
topology: v6e:2x2x1
jax: 0.10.0
libtpu: 0.0.40
codegen_flags: <defaults>
</compile_context>

<pallas_src>
import functools
import math

import jax
import jax.numpy as jnp
from jax.experimental import pallas as pl
from jax.experimental.pallas import tpu as pltpu

# ----------------------------- small synthetic PhoBERT config -----------------------------
VOCAB = 120
HIDDEN = 32
NUM_HEADS = 2
HEAD_DIM = HIDDEN // NUM_HEADS
NUM_LAYERS = 2
INTERMEDIATE = 64
MAX_POS = 40
NUM_CLASSES = 3
LN_EPS = 1e-5
PAD_IDX = 1          # RoBERTa / PhoBERT padding_idx
LANE = 128           # lane padding for one-hot tables and logits
EMB_ROWS = 128       # word table (120) and pos table (40) each padded to 128 rows


# ----------------------------------- fused Pallas kernel ----------------------------------
def _gelu(x):
    # TODO(synk): PhoBERT uses exact erf-GELU; tanh approximation used here for robust TPU lowering.
    return 0.5 * x * (1.0 + jnp.tanh(0.7978845608028654 * (x + 0.044715 * x * x * x)))


def _fused_phobert_kernel(
    tok_ref,        # [B*S, 2] int32   (word_id, pos_id)
    mask_ref,       # [B, 1, S] f32
    emb_ref,        # [2*EMB_ROWS, H] bf16  (word(+type) rows 0:128, pos rows 128:256)
    wbig_ref,       # [L, H, 3H + H + I] bf16  (wqkv 0:96, wo 96:128, wff1 128:192)
    wff2_ref,       # [L, I, H] bf16
    vec_ref,        # [L, 8, 128] f32  (bqkv, bo, ln1g, ln1b, bff1, bff2, ln2g, ln2b)
    headw_ref,      # [H, 128 + H] bf16  (cls_w padded 0:128, pool_w 128:160)
    headv_ref,      # [4, 128] f32  (emb_ln_g, emb_ln_b, pool_b, cls_b padded)
    logits_ref,     # [B, 128] f32
    *, B, S,
):
    N = B * S
    scale = 1.0 / math.sqrt(HEAD_DIM)

    def layernorm(x, g, b):
        mu = jnp.mean(x, axis=-1, keepdims=True)
        var = jnp.mean(jnp.square(x - mu), axis=-1, keepdims=True)
        return (x - mu) * jax.lax.rsqrt(var + LN_EPS) * g + b

    # ---- embedding gather as one-hot matmul (single MXU pass, K = 256) ----
    lane_iota = jax.lax.broadcasted_iota(jnp.int32, (N, EMB_ROWS), 1)
    word_oh = jnp.where(lane_iota == tok_ref[:, 0:1], 1.0, 0.0).astype(jnp.bfloat16)
    pos_oh = jnp.where(lane_iota == tok_ref[:, 1:2], 1.0, 0.0).astype(jnp.bfloat16)
    onehot = jnp.concatenate([word_oh, pos_oh], axis=-1)                       # [N, 256]
    h = jnp.dot(onehot, emb_ref[...], preferred_element_type=jnp.float32)      # [N, H] f32

    # embedding LayerNorm (embedding dropout: identity at inference)
    h = layernorm(h, headv_ref[0:1, :HIDDEN], headv_ref[1:2, :HIDDEN])

    # additive attention mask: [B, 1, S]
    mask_add = (1.0 - mask_ref[...]) * -1e9

    for l in range(NUM_LAYERS):                                                # static unroll
        wqkv = wbig_ref[l, :, 0:3 * HIDDEN]                                    # [H, 3H] bf16
        wo = wbig_ref[l, :, 3 * HIDDEN:4 * HIDDEN]                             # [H, H]  bf16
        wff1 = wbig_ref[l, :, 4 * HIDDEN:4 * HIDDEN + INTERMEDIATE]            # [H, I]  bf16
        wff2 = wff2_ref[l]                                                     # [I, H]  bf16

        bqkv = vec_ref[l, 0:1, :3 * HIDDEN]
        bo = vec_ref[l, 1:2, :HIDDEN]
        ln1g = vec_ref[l, 2:3, :HIDDEN]
        ln1b = vec_ref[l, 3:4, :HIDDEN]
        bff1 = vec_ref[l, 4:5, :INTERMEDIATE]
        bff2 = vec_ref[l, 5:6, :HIDDEN]
        ln2g = vec_ref[l, 6:7, :HIDDEN]
        ln2b = vec_ref[l, 7:8, :HIDDEN]

        # ---- fused QKV projection: one MXU pass with N = 3*HIDDEN ----
        qkv = jnp.dot(h.astype(jnp.bfloat16), wqkv,
                      preferred_element_type=jnp.float32) + bqkv               # [N, 3H] f32

        ctx_heads = []
        for hd in range(NUM_HEADS):                                            # static unroll
            lo = hd * HEAD_DIM
            q_h = qkv[:, lo:lo + HEAD_DIM].reshape(B, S, HEAD_DIM).astype(jnp.bfloat16)
            k_h = qkv[:, HIDDEN + lo:HIDDEN + lo + HEAD_DIM].reshape(B, S, HEAD_DIM).astype(jnp.bfloat16)
            v_h = qkv[:, 2 * HIDDEN + lo:2 * HIDDEN + lo + HEAD_DIM].reshape(B, S, HEAD_DIM).astype(jnp.bfloat16)

            s = jnp.einsum("bqd,bkd->bqk", q_h, k_h,
                           preferred_element_type=jnp.float32) * scale + mask_add   # [B,S,S] f32
            s = s - jnp.max(s, axis=-1, keepdims=True)
            p = jnp.exp(s)
            p = p * pl.reciprocal(jnp.sum(p, axis=-1, keepdims=True), approx=True)
            ctx = jnp.einsum("bqk,bkd->bqd", p.astype(jnp.bfloat16), v_h,
                             preferred_element_type=jnp.float32)                    # [B,S,Dh] f32
            ctx_heads.append(ctx.reshape(N, HEAD_DIM))

        # merge heads + single output projection (one K=H matmul)
        ctx_all = jnp.concatenate(ctx_heads, axis=-1).astype(jnp.bfloat16)     # [N, H]
        attn_out = jnp.dot(ctx_all, wo, preferred_element_type=jnp.float32) + bo
        h = layernorm(h + attn_out, ln1g, ln1b)

        # ---- feed-forward ----
        ff = jnp.dot(h.astype(jnp.bfloat16), wff1,
                     preferred_element_type=jnp.float32) + bff1
        ff = _gelu(ff)
        ff = jnp.dot(ff.astype(jnp.bfloat16), wff2,
                     preferred_element_type=jnp.float32) + bff2
        h = layernorm(h + ff, ln2g, ln2b)

    # ---- pooler: tanh(Linear(CLS token)) ----
    cls = h.reshape(B, S, HIDDEN)[:, 0, :]                                     # [B, H]
    poolw = headw_ref[:, LANE:LANE + HIDDEN]                                   # [H, H] bf16
    pooled = jnp.tanh(jnp.dot(cls.astype(jnp.bfloat16), poolw,
                              preferred_element_type=jnp.float32)
                      + headv_ref[2:3, :HIDDEN])

    # dropout(0.3): identity in eval mode

    # ---- classification head (weights pre-padded to 128 lanes -> lane-unmasked store) ----
    clsw = headw_ref[:, 0:LANE]                                                # [H, 128] bf16
    logits_ref[...] = jnp.dot(pooled.astype(jnp.bfloat16), clsw,
                              preferred_element_type=jnp.float32) + headv_ref[3:4, :]


# ----------------------------------- parameter init ---------------------------------------
def init_params(key):
    def nrm(k, shape):
        return 0.02 * jax.random.normal(k, shape, dtype=jnp.float32)

    keys = iter(jax.random.split(key, 8 + NUM_LAYERS * 6 + 4))
    p = {
        "word_emb": nrm(next(keys), (VOCAB, HIDDEN)),
        "pos_emb": nrm(next(keys), (MAX_POS, HIDDEN)),
        "type_emb": nrm(next(keys), (1, HIDDEN)),
        "emb_ln_g": jnp.ones((HIDDEN,), jnp.float32),
        "emb_ln_b": jnp.zeros((HIDDEN,), jnp.float32),
        "layers": [],
        "pool_w": nrm(next(keys), (HIDDEN, HIDDEN)),
        "pool_b": jnp.zeros((HIDDEN,), jnp.float32),
        "cls_w": nrm(next(keys), (HIDDEN, NUM_CLASSES)),
        "cls_b": jnp.zeros((NUM_CLASSES,), jnp.float32),
    }
    for _ in range(NUM_LAYERS):
        layer = {
            "wq": nrm(next(keys), (HIDDEN, HIDDEN)), "bq": jnp.zeros((HIDDEN,), jnp.float32),
            "wk": nrm(next(keys), (HIDDEN, HIDDEN)), "bk": jnp.zeros((HIDDEN,), jnp.float32),
            "wv": nrm(next(keys), (HIDDEN, HIDDEN)), "bv": jnp.zeros((HIDDEN,), jnp.float32),
            "wo": nrm(next(keys), (HIDDEN, HIDDEN)), "bo": jnp.zeros((HIDDEN,), jnp.float32),
            "ln1_g": jnp.ones((HIDDEN,), jnp.float32), "ln1_b": jnp.zeros((HIDDEN,), jnp.float32),
            "w_ff1": nrm(next(keys), (HIDDEN, INTERMEDIATE)), "b_ff1": jnp.zeros((INTERMEDIATE,), jnp.float32),
            "w_ff2": nrm(next(keys), (INTERMEDIATE, HIDDEN)), "b_ff2": jnp.zeros((HIDDEN,), jnp.float32),
            "ln2_g": jnp.ones((HIDDEN,), jnp.float32), "ln2_b": jnp.zeros((HIDDEN,), jnp.float32),
        }
        p["layers"].append(layer)
    return p


# --------------------- one-time weight packing (hoisted out of the forward) ----------------
def prepare_packed_params(params):
    layers = params["layers"]

    # embedding slab: word(+type) rows 0:128, pos rows 128:256   -> [256, H] bf16
    word = jnp.zeros((EMB_ROWS, HIDDEN), jnp.float32).at[:VOCAB].set(
        params["word_emb"] + params["type_emb"][0][None, :])
    pos = jnp.zeros((EMB_ROWS, HIDDEN), jnp.float32).at[:MAX_POS].set(params["pos_emb"])
    emb_tab = jnp.concatenate([word, pos], axis=0).astype(jnp.bfloat16)

    # per-layer matmul slab: [L, H, 3H + H + I]  (wqkv | wo | wff1), bf16
    wbig = jnp.stack([
        jnp.concatenate(
            [jnp.concatenate([l["wq"], l["wk"], l["wv"]], axis=1), l["wo"], l["w_ff1"]],
            axis=1)
        for l in layers]).astype(jnp.bfloat16)
    wff2 = jnp.stack([l["w_ff2"] for l in layers]).astype(jnp.bfloat16)        # [L, I, H]

    def padrow(v):
        return jnp.zeros((LANE,), jnp.float32).at[:v.shape[0]].set(v)

    # per-layer bias / LayerNorm rows: [L, 8, 128] f32
    vec = jnp.stack([
        jnp.stack([padrow(jnp.concatenate([l["bq"], l["bk"], l["bv"]])),
                   padrow(l["bo"]), padrow(l["ln1_g"]), padrow(l["ln1_b"]),
                   padrow(l["b_ff1"]), padrow(l["b_ff2"]),
                   padrow(l["ln2_g"]), padrow(l["ln2_b"])])
        for l in layers])

    # head weights: cls_w padded to 128 lanes (0:128) | pool_w (128:160), bf16
    clsw_pad = jnp.zeros((HIDDEN, LANE), jnp.float32).at[:, :NUM_CLASSES].set(params["cls_w"])
    headw = jnp.concatenate([clsw_pad, params["pool_w"]], axis=1).astype(jnp.bfloat16)
    # head vectors: emb_ln_g, emb_ln_b, pool_b, cls_b (padded), f32
    headv = jnp.stack([padrow(params["emb_ln_g"]), padrow(params["emb_ln_b"]),
                       padrow(params["pool_b"]), padrow(params["cls_b"])])

    return {"emb_tab": emb_tab, "wbig": wbig, "wff2": wff2, "vec": vec,
            "headw": headw, "headv": headv}


# ------------------------------------ forward pass ----------------------------------------
def phobert_classifier_forward(packed, input_ids, attention_mask):
    B, S = input_ids.shape

    # RoBERTa position ids: cumsum of mask, offset by padding_idx, padding positions -> padding_idx
    pos_ids = (jnp.cumsum(attention_mask, axis=1) * attention_mask + PAD_IDX).astype(jnp.int32)
    tok = jnp.stack([input_ids.astype(jnp.int32), pos_ids], axis=-1).reshape(B * S, 2)
    mask = attention_mask.astype(jnp.float32)[:, None, :]                      # [B, 1, S]

    kernel = functools.partial(_fused_phobert_kernel, B=B, S=S)
    logits_pad = pl.pallas_call(
        kernel,
        out_shape=jax.ShapeDtypeStruct((B, LANE), jnp.float32),
        in_specs=[pl.BlockSpec(memory_space=pltpu.MemorySpace.VMEM)] * 8,
        out_specs=pl.BlockSpec(memory_space=pltpu.MemorySpace.VMEM),
    )(tok, mask,
      packed["emb_tab"], packed["wbig"], packed["wff2"], packed["vec"],
      packed["headw"], packed["headv"])

    return logits_pad[:, :NUM_CLASSES]


# ----------------------------------------- main --------------------------------------------
if __name__ == "__main__":
    key = jax.random.PRNGKey(0)
    pkey, ikey = jax.random.split(key)
    params = init_params(pkey)
    packed = prepare_packed_params(params)      # one-time packing, outside the jitted path

    B, S = 2, 8
    input_ids = jax.random.randint(ikey, (B, S), 2, VOCAB, dtype=jnp.int32)
    attention_mask = jnp.array(
        [[1, 1, 1, 1, 1, 1, 1, 1],
         [1, 1, 1, 1, 1, 1, 0, 0]], dtype=jnp.int32)
    # put pad token at masked positions (consistent with padding_idx=1)
    input_ids = jnp.where(attention_mask == 1, input_ids, PAD_IDX)

    fwd = jax.jit(phobert_classifier_forward)
    logits = fwd(packed, input_ids, attention_mask)
    jax.block_until_ready(logits)
    assert logits.shape == (B, NUM_CLASSES)
    assert bool(jnp.all(jnp.isfinite(logits)))
    print("KERNEL_OK")
</pallas_src>

<mosaic_0001>
module attributes {stable_mosaic.version = 11 : i64} {
  func.func @_fused_phobert_kernel(%arg0: memref<16x2xi32, #tpu.memory_space<vmem>>, %arg1: memref<2x1x8xf32, #tpu.memory_space<vmem>>, %arg2: memref<256x32xbf16, #tpu.memory_space<vmem>>, %arg3: memref<2x32x192xbf16, #tpu.memory_space<vmem>>, %arg4: memref<2x64x32xbf16, #tpu.memory_space<vmem>>, %arg5: memref<2x8x128xf32, #tpu.memory_space<vmem>>, %arg6: memref<32x160xbf16, #tpu.memory_space<vmem>>, %arg7: memref<4x128xf32, #tpu.memory_space<vmem>>, %arg8: memref<2x128xf32, #tpu.memory_space<vmem>>) attributes {dimension_semantics = [], scalar_prefetch = 0 : i64, scratch_operands = 0 : i64, tpu.core_type = #tpu.core_type<tc>} {
    %0 = tpu.iota {dimensions = array<i32: 1>} : vector<16x128xi32>
    %c0 = arith.constant 0 : index
    %c0_0 = arith.constant 0 : index
    %1 = vector.load %arg0[%c0, %c0_0] : memref<16x2xi32, #tpu.memory_space<vmem>>, vector<16x1xi32>
    %2 = vector.broadcast %1 : vector<16x1xi32> to vector<16x128xi32>
    %3 = arith.cmpi eq, %0, %2 : vector<16x128xi32>
    %cst = arith.constant 1.000000e+00 : f32
    %cst_1 = arith.constant 0.000000e+00 : f32
    %4 = vector.broadcast %cst : f32 to vector<16x128xf32>
    %5 = vector.broadcast %cst_1 : f32 to vector<16x128xf32>
    %6 = arith.select %3, %4, %5 : vector<16x128xi1>, vector<16x128xf32>
    %7 = arith.truncf %6 : vector<16x128xf32> to vector<16x128xbf16>
    %c0_2 = arith.constant 0 : index
    %c1 = arith.constant 1 : index
    %8 = vector.load %arg0[%c0_2, %c1] : memref<16x2xi32, #tpu.memory_space<vmem>>, vector<16x1xi32>
    %9 = vector.broadcast %8 : vector<16x1xi32> to vector<16x128xi32>
    %10 = arith.cmpi eq, %0, %9 : vector<16x128xi32>
    %cst_3 = arith.constant 1.000000e+00 : f32
    %cst_4 = arith.constant 0.000000e+00 : f32
    %11 = vector.broadcast %cst_3 : f32 to vector<16x128xf32>
    %12 = vector.broadcast %cst_4 : f32 to vector<16x128xf32>
    %13 = arith.select %10, %11, %12 : vector<16x128xi1>, vector<16x128xf32>
    %14 = arith.truncf %13 : vector<16x128xf32> to vector<16x128xbf16>
    %15 = tpu.concatenate %7, %14 in 1 : vector<16x128xbf16>, vector<16x128xbf16> -> vector<16x256xbf16>
    %c0_5 = arith.constant 0 : index
    %c0_6 = arith.constant 0 : index
    %16 = vector.load %arg2[%c0_5, %c0_6] : memref<256x32xbf16, #tpu.memory_space<vmem>>, vector<256x32xbf16>
    %cst_7 = arith.constant dense<0.000000e+00> : vector<16x32xf32>
    %17 = tpu.matmul %15, %16, %cst_7 {dimension_numbers = #tpu.dot_dimension_numbers<[1], [0], [0], [1], [0, 0, 1, 1], [], []>} : vector<16x256xbf16>, vector<256x32xbf16>, vector<16x32xf32> -> vector<16x32xf32>
    %c0_8 = arith.constant 0 : index
    %c0_9 = arith.constant 0 : index
    %18 = vector.load %arg7[%c0_8, %c0_9] : memref<4x128xf32, #tpu.memory_space<vmem>>, vector<1x32xf32>
    %c1_10 = arith.constant 1 : index
    %c0_11 = arith.constant 0 : index
    %19 = vector.load %arg7[%c1_10, %c0_11] : memref<4x128xf32, #tpu.memory_space<vmem>>, vector<1x32xf32>
    %cst_12 = arith.constant dense<0.000000e+00> : vector<16xf32>
    %20 = vector.multi_reduction <add>, %17, %cst_12 [1] : vector<16x32xf32> to vector<16xf32>
    %21 = vector.shape_cast %20 : vector<16xf32> to vector<16x1xf32>
    %cst_13 = arith.constant 3.200000e+01 : f32
    %22 = vector.broadcast %cst_13 : f32 to vector<16x1xf32>
    %23 = arith.divf %21, %22 : vector<16x1xf32>
    %24 = vector.broadcast %23 : vector<16x1xf32> to vector<16x32xf32>
    %25 = arith.subf %17, %24 : vector<16x32xf32>
    %26 = arith.mulf %25, %25 : vector<16x32xf32>
    %cst_14 = arith.constant dense<0.000000e+00> : vector<16xf32>
    %27 = vector.multi_reduction <add>, %26, %cst_14 [1] : vector<16x32xf32> to vector<16xf32>
    %28 = vector.shape_cast %27 : vector<16xf32> to vector<16x1xf32>
    %cst_15 = arith.constant 3.200000e+01 : f32
    %29 = vector.broadcast %cst_15 : f32 to vector<16x1xf32>
    %30 = arith.divf %28, %29 : vector<16x1xf32>
    %31 = vector.broadcast %23 : vector<16x1xf32> to vector<16x32xf32>
    %32 = arith.subf %17, %31 : vector<16x32xf32>
    %cst_16 = arith.constant 9.99999974E-6 : f32
    %33 = vector.broadcast %cst_16 : f32 to vector<16x1xf32>
    %34 = arith.addf %30, %33 : vector<16x1xf32>
    %35 = math.rsqrt %34 : vector<16x1xf32>
    %36 = vector.broadcast %35 : vector<16x1xf32> to vector<16x32xf32>
    %37 = arith.mulf %32, %36 : vector<16x32xf32>
    %38 = vector.broadcast %18 : vector<1x32xf32> to vector<16x32xf32>
    %39 = arith.mulf %37, %38 : vector<16x32xf32>
    %40 = vector.broadcast %19 : vector<1x32xf32> to vector<16x32xf32>
    %41 = arith.addf %39, %40 : vector<16x32xf32>
    %c0_17 = arith.constant 0 : index
    %c0_18 = arith.constant 0 : index
    %c0_19 = arith.constant 0 : index
    %42 = vector.load %arg1[%c0_17, %c0_18, %c0_19] : memref<2x1x8xf32, #tpu.memory_space<vmem>>, vector<2x1x8xf32>
    %cst_20 = arith.constant 1.000000e+00 : f32
    %43 = vector.broadcast %cst_20 : f32 to vector<2x1x8xf32>
    %44 = arith.subf %43, %42 : vector<2x1x8xf32>
    %cst_21 = arith.constant -1.000000e+09 : f32
    %45 = vector.broadcast %cst_21 : f32 to vector<2x1x8xf32>
    %46 = arith.mulf %44, %45 : vector<2x1x8xf32>
    %c0_22 = arith.constant 0 : index
    %c0_23 = arith.constant 0 : index
    %c0_24 = arith.constant 0 : index
    %47 = vector.load %arg3[%c0_22, %c0_23, %c0_24] : memref<2x32x192xbf16, #tpu.memory_space<vmem>>, vector<1x32x96xbf16>
    %48 = vector.shape_cast %47 : vector<1x32x96xbf16> to vector<32x96xbf16>
    %c0_25 = arith.constant 0 : index
    %c0_26 = arith.constant 0 : index
    %c96 = arith.constant 96 : index
    %49 = vector.load %arg3[%c0_25, %c0_26, %c96] : memref<2x32x192xbf16, #tpu.memory_space<vmem>>, vector<1x32x32xbf16>
    %50 = vector.shape_cast %49 : vector<1x32x32xbf16> to vector<32x32xbf16>
    %c0_27 = arith.constant 0 : index
    %c0_28 = arith.constant 0 : index
    %c128 = arith.constant 128 : index
    %51 = vector.load %arg3[%c0_27, %c0_28, %c128] : memref<2x32x192xbf16, #tpu.memory_space<vmem>>, vector<1x32x64xbf16>
    %52 = vector.shape_cast %51 : vector<1x32x64xbf16> to vector<32x64xbf16>
    %c0_29 = arith.constant 0 : index
    %c0_30 = arith.constant 0 : index
    %c0_31 = arith.constant 0 : index
    %53 = vector.load %arg4[%c0_29, %c0_30, %c0_31] : memref<2x64x32xbf16, #tpu.memory_space<vmem>>, vector<1x64x32xbf16>
    %54 = vector.shape_cast %53 : vector<1x64x32xbf16> to vector<64x32xbf16>
    %c0_32 = arith.constant 0 : index
    %c0_33 = arith.constant 0 : index
    %c0_34 = arith.constant 0 : index
    %55 = vector.load %arg5[%c0_32, %c0_33, %c0_34] : memref<2x8x128xf32, #tpu.memory_space<vmem>>, vector<1x1x96xf32>
    %56 = vector.shape_cast %55 : vector<1x1x96xf32> to vector<1x96xf32>
    %c0_35 = arith.constant 0 : index
    %c1_36 = arith.constant 1 : index
    %c0_37 = arith.constant 0 : index
    %57 = vector.load %arg5[%c0_35, %c1_36, %c0_37] : memref<2x8x128xf32, #tpu.memory_space<vmem>>, vector<1x1x32xf32>
    %58 = vector.shape_cast %57 : vector<1x1x32xf32> to vector<1x32xf32>
    %c0_38 = arith.constant 0 : index
    %c2 = arith.constant 2 : index
    %c0_39 = arith.constant 0 : index
    %59 = vector.load %arg5[%c0_38, %c2, %c0_39] : memref<2x8x128xf32, #tpu.memory_space<vmem>>, vector<1x1x32xf32>
    %60 = vector.shape_cast %59 : vector<1x1x32xf32> to vector<1x32xf32>
    %c0_40 = arith.constant 0 : index
    %c3 = arith.constant 3 : index
    %c0_41 = arith.constant 0 : index
    %61 = vector.load %arg5[%c0_40, %c3, %c0_41] : memref<2x8x128xf32, #tpu.memory_space<vmem>>, vector<1x1x32xf32>
    %62 = vector.shape_cast %61 : vector<1x1x32xf32> to vector<1x32xf32>
    %c0_42 = arith.constant 0 : index
    %c4 = arith.constant 4 : index
    %c0_43 = arith.constant 0 : index
    %63 = vector.load %arg5[%c0_42, %c4, %c0_43] : memref<2x8x128xf32, #tpu.memory_space<vmem>>, vector<1x1x64xf32>
    %64 = vector.shape_cast %63 : vector<1x1x64xf32> to vector<1x64xf32>
    %c0_44 = arith.constant 0 : index
    %c5 = arith.constant 5 : index
    %c0_45 = arith.constant 0 : index
    %65 = vector.load %arg5[%c0_44, %c5, %c0_45] : memref<2x8x128xf32, #tpu.memory_space<vmem>>, vector<1x1x32xf32>
    %66 = vector.shape_cast %65 : vector<1x1x32xf32> to vector<1x32xf32>
    %c0_46 = arith.constant 0 : index
    %c6 = arith.constant 6 : index
    %c0_47 = arith.constant 0 : index
    %67 = vector.load %arg5[%c0_46, %c6, %c0_47] : memref<2x8x128xf32, #tpu.memory_space<vmem>>, vector<1x1x32xf32>
    %68 = vector.shape_cast %67 : vector<1x1x32xf32> to vector<1x32xf32>
    %c0_48 = arith.constant 0 : index
    %c7 = arith.constant 7 : index
    %c0_49 = arith.constant 0 : index
    %69 = vector.load %arg5[%c0_48, %c7, %c0_49] : memref<2x8x128xf32, #tpu.memory_space<vmem>>, vector<1x1x32xf32>
    %70 = vector.shape_cast %69 : vector<1x1x32xf32> to vector<1x32xf32>
    %71 = arith.truncf %41 : vector<16x32xf32> to vector<16x32xbf16>
    %cst_50 = arith.constant dense<0.000000e+00> : vector<16x96xf32>
    %72 = tpu.matmul %71, %48, %cst_50 {dimension_numbers = #tpu.dot_dimension_numbers<[1], [0], [0], [1], [0, 0, 1, 1], [], []>} : vector<16x32xbf16>, vector<32x96xbf16>, vector<16x96xf32> -> vector<16x96xf32>
    %73 = vector.broadcast %56 : vector<1x96xf32> to vector<16x96xf32>
    %74 = arith.addf %72, %73 : vector<16x96xf32>
    %75 = vector.extract_strided_slice %74 {offsets = [0, 0], sizes = [16, 16], strides = [1, 1]} : vector<16x96xf32> to vector<16x16xf32>
    %76 = vector.shape_cast %75 : vector<16x16xf32> to vector<2x8x16xf32>
    %77 = arith.truncf %76 : vector<2x8x16xf32> to vector<2x8x16xbf16>
    %78 = vector.extract_strided_slice %74 {offsets = [0, 32], sizes = [16, 16], strides = [1, 1]} : vector<16x96xf32> to vector<16x16xf32>
    %79 = vector.shape_cast %78 : vector<16x16xf32> to vector<2x8x16xf32>
    %80 = arith.truncf %79 : vector<2x8x16xf32> to vector<2x8x16xbf16>
    %81 = vector.extract_strided_slice %74 {offsets = [0, 64], sizes = [16, 16], strides = [1, 1]} : vector<16x96xf32> to vector<16x16xf32>
    %82 = vector.shape_cast %81 : vector<16x16xf32> to vector<2x8x16xf32>
    %83 = arith.truncf %82 : vector<2x8x16xf32> to vector<2x8x16xbf16>
    "tpu.trace_start"() <{level = 10 : i32, message = "bqd,bkd->bqk"}> : () -> ()
    %cst_51 = arith.constant dense<0.000000e+00> : vector<2x8x8xf32>
    %84 = tpu.matmul %77, %80, %cst_51 {dimension_numbers = #tpu.dot_dimension_numbers<[2], [2], [1], [1], [0, 0, 0, 1, 1, 1], [0], [0]>} : vector<2x8x16xbf16>, vector<2x8x16xbf16>, vector<2x8x8xf32> -> vector<2x8x8xf32>
    "tpu.trace_stop"() : () -> ()
    %cst_52 = arith.constant 2.500000e-01 : f32
    %85 = vector.broadcast %cst_52 : f32 to vector<2x8x8xf32>
    %86 = arith.mulf %84, %85 : vector<2x8x8xf32>
    %87 = vector.broadcast %46 : vector<2x1x8xf32> to vector<2x8x8xf32>
    %88 = arith.addf %86, %87 : vector<2x8x8xf32>
    %cst_53 = arith.constant dense<0xFF800000> : vector<2x8xf32>
    %89 = vector.multi_reduction <maximumf>, %88, %cst_53 [2] : vector<2x8x8xf32> to vector<2x8xf32>
    %90 = vector.shape_cast %89 : vector<2x8xf32> to vector<2x8x1xf32>
    %91 = vector.broadcast %90 : vector<2x8x1xf32> to vector<2x8x8xf32>
    %92 = arith.subf %88, %91 : vector<2x8x8xf32>
    %93 = math.exp %92 : vector<2x8x8xf32>
    %cst_54 = arith.constant dense<0.000000e+00> : vector<2x8xf32>
    %94 = vector.multi_reduction <add>, %93, %cst_54 [2] : vector<2x8x8xf32> to vector<2x8xf32>
    %95 = vector.shape_cast %94 : vector<2x8xf32> to vector<2x8x1xf32>
    %96 = tpu.reciprocal %95 {approx = true} : vector<2x8x1xf32> -> vector<2x8x1xf32>
    %97 = vector.broadcast %96 : vector<2x8x1xf32> to vector<2x8x8xf32>
    %98 = arith.mulf %93, %97 : vector<2x8x8xf32>
    %99 = arith.truncf %98 : vector<2x8x8xf32> to vector<2x8x8xbf16>
    "tpu.trace_start"() <{level = 10 : i32, message = "bqk,bkd->bqd"}> : () -> ()
    %cst_55 = arith.constant dense<0.000000e+00> : vector<2x8x16xf32>
    %100 = tpu.matmul %99, %83, %cst_55 {dimension_numbers = #tpu.dot_dimension_numbers<[2], [1], [1], [2], [0, 0, 0, 1, 1, 2], [0], [0]>} : vector<2x8x8xbf16>, vector<2x8x16xbf16>, vector<2x8x16xf32> -> vector<2x8x16xf32>
    "tpu.trace_stop"() : () -> ()
    %101 = vector.shape_cast %100 : vector<2x8x16xf32> to vector<16x16xf32>
    %102 = vector.extract_strided_slice %74 {offsets = [0, 16], sizes = [16, 16], strides = [1, 1]} : vector<16x96xf32> to vector<16x16xf32>
    %103 = vector.shape_cast %102 : vector<16x16xf32> to vector<2x8x16xf32>
    %104 = arith.truncf %103 : vector<2x8x16xf32> to vector<2x8x16xbf16>
    %105 = vector.extract_strided_slice %74 {offsets = [0, 48], sizes = [16, 16], strides = [1, 1]} : vector<16x96xf32> to vector<16x16xf32>
    %106 = vector.shape_cast %105 : vector<16x16xf32> to vector<2x8x16xf32>
    %107 = arith.truncf %106 : vector<2x8x16xf32> to vector<2x8x16xbf16>
    %108 = vector.extract_strided_slice %74 {offsets = [0, 80], sizes = [16, 16], strides = [1, 1]} : vector<16x96xf32> to vector<16x16xf32>
    %109 = vector.shape_cast %108 : vector<16x16xf32> to vector<2x8x16xf32>
    %110 = arith.truncf %109 : vector<2x8x16xf32> to vector<2x8x16xbf16>
    "tpu.trace_start"() <{level = 10 : i32, message = "bqd,bkd->bqk"}> : () -> ()
    %cst_56 = arith.constant dense<0.000000e+00> : vector<2x8x8xf32>
    %111 = tpu.matmul %104, %107, %cst_56 {dimension_numbers = #tpu.dot_dimension_numbers<[2], [2], [1], [1], [0, 0, 0, 1, 1, 1], [0], [0]>} : vector<2x8x16xbf16>, vector<2x8x16xbf16>, vector<2x8x8xf32> -> vector<2x8x8xf32>
    "tpu.trace_stop"() : () -> ()
    %cst_57 = arith.constant 2.500000e-01 : f32
    %112 = vector.broadcast %cst_57 : f32 to vector<2x8x8xf32>
    %113 = arith.mulf %111, %112 : vector<2x8x8xf32>
    %114 = vector.broadcast %46 : vector<2x1x8xf32> to vector<2x8x8xf32>
    %115 = arith.addf %113, %114 : vector<2x8x8xf32>
    %cst_58 = arith.constant dense<0xFF800000> : vector<2x8xf32>
    %116 = vector.multi_reduction <maximumf>, %115, %cst_58 [2] : vector<2x8x8xf32> to vector<2x8xf32>
    %117 = vector.shape_cast %116 : vector<2x8xf32> to vector<2x8x1xf32>
    %118 = vector.broadcast %117 : vector<2x8x1xf32> to vector<2x8x8xf32>
    %119 = arith.subf %115, %118 : vector<2x8x8xf32>
    %120 = math.exp %119 : vector<2x8x8xf32>
    %cst_59 = arith.constant dense<0.000000e+00> : vector<2x8xf32>
    %121 = vector.multi_reduction <add>, %120, %cst_59 [2] : vector<2x8x8xf32> to vector<2x8xf32>
    %122 = vector.shape_cast %121 : vector<2x8xf32> to vector<2x8x1xf32>
    %123 = tpu.reciprocal %122 {approx = true} : vector<2x8x1xf32> -> vector<2x8x1xf32>
    %124 = vector.broadcast %123 : vector<2x8x1xf32> to vector<2x8x8xf32>
    %125 = arith.mulf %120, %124 : vector<2x8x8xf32>
    %126 = arith.truncf %125 : vector<2x8x8xf32> to vector<2x8x8xbf16>
    "tpu.trace_start"() <{level = 10 : i32, message = "bqk,bkd->bqd"}> : () -> ()
    %cst_60 = arith.constant dense<0.000000e+00> : vector<2x8x16xf32>
    %127 = tpu.matmul %126, %110, %cst_60 {dimension_numbers = #tpu.dot_dimension_numbers<[2], [1], [1], [2], [0, 0, 0, 1, 1, 2], [0], [0]>} : vector<2x8x8xbf16>, vector<2x8x16xbf16>, vector<2x8x16xf32> -> vector<2x8x16xf32>
    "tpu.trace_stop"() : () -> ()
    %128 = vector.shape_cast %127 : vector<2x8x16xf32> to vector<16x16xf32>
    %129 = tpu.concatenate %101, %128 in 1 : vector<16x16xf32>, vector<16x16xf32> -> vector<16x32xf32>
    %130 = arith.truncf %129 : vector<16x32xf32> to vector<16x32xbf16>
    %cst_61 = arith.constant dense<0.000000e+00> : vector<16x32xf32>
    %131 = tpu.matmul %130, %50, %cst_61 {dimension_numbers = #tpu.dot_dimension_numbers<[1], [0], [0], [1], [0, 0, 1, 1], [], []>} : vector<16x32xbf16>, vector<32x32xbf16>, vector<16x32xf32> -> vector<16x32xf32>
    %132 = vector.broadcast %58 : vector<1x32xf32> to vector<16x32xf32>
    %133 = arith.addf %131, %132 : vector<16x32xf32>
    %134 = arith.addf %41, %133 : vector<16x32xf32>
    %cst_62 = arith.constant dense<0.000000e+00> : vector<16xf32>
    %135 = vector.multi_reduction <add>, %134, %cst_62 [1] : vector<16x32xf32> to vector<16xf32>
    %136 = vector.shape_cast %135 : vector<16xf32> to vector<16x1xf32>
    %cst_63 = arith.constant 3.200000e+01 : f32
    %137 = vector.broadcast %cst_63 : f32 to vector<16x1xf32>
    %138 = arith.divf %136, %137 : vector<16x1xf32>
    %139 = vector.broadcast %138 : vector<16x1xf32> to vector<16x32xf32>
    %140 = arith.subf %134, %139 : vector<16x32xf32>
    %141 = arith.mulf %140, %140 : vector<16x32xf32>
    %cst_64 = arith.constant dense<0.000000e+00> : vector<16xf32>
    %142 = vector.multi_reduction <add>, %141, %cst_64 [1] : vector<16x32xf32> to vector<16xf32>
    %143 = vector.shape_cast %142 : vector<16xf32> to vector<16x1xf32>
    %cst_65 = arith.constant 3.200000e+01 : f32
    %144 = vector.broadcast %cst_65 : f32 to vector<16x1xf32>
    %145 = arith.divf %143, %144 : vector<16x1xf32>
    %146 = vector.broadcast %138 : vector<16x1xf32> to vector<16x32xf32>
    %147 = arith.subf %134, %146 : vector<16x32xf32>
    %cst_66 = arith.constant 9.99999974E-6 : f32
    %148 = vector.broadcast %cst_66 : f32 to vector<16x1xf32>
    %149 = arith.addf %145, %148 : vector<16x1xf32>
    %150 = math.rsqrt %149 : vector<16x1xf32>
    %151 = vector.broadcast %150 : vector<16x1xf32> to vector<16x32xf32>
    %152 = arith.mulf %147, %151 : vector<16x32xf32>
    %153 = vector.broadcast %60 : vector<1x32xf32> to vector<16x32xf32>
    %154 = arith.mulf %152, %153 : vector<16x32xf32>
    %155 = vector.broadcast %62 : vector<1x32xf32> to vector<16x32xf32>
    %156 = arith.addf %154, %155 : vector<16x32xf32>
    %157 = arith.truncf %156 : vector<16x32xf32> to vector<16x32xbf16>
    %cst_67 = arith.constant dense<0.000000e+00> : vector<16x64xf32>
    %158 = tpu.matmul %157, %52, %cst_67 {dimension_numbers = #tpu.dot_dimension_numbers<[1], [0], [0], [1], [0, 0, 1, 1], [], []>} : vector<16x32xbf16>, vector<32x64xbf16>, vector<16x64xf32> -> vector<16x64xf32>
    %159 = vector.broadcast %64 : vector<1x64xf32> to vector<16x64xf32>
    %160 = arith.addf %158, %159 : vector<16x64xf32>
    %cst_68 = arith.constant 5.000000e-01 : f32
    %161 = vector.broadcast %cst_68 : f32 to vector<16x64xf32>
    %162 = arith.mulf %161, %160 : vector<16x64xf32>
    %cst_69 = arith.constant 4.471500e-02 : f32
    %163 = vector.broadcast %cst_69 : f32 to vector<16x64xf32>
    %164 = arith.mulf %163, %160 : vector<16x64xf32>
    %165 = arith.mulf %164, %160 : vector<16x64xf32>
    %166 = arith.mulf %165, %160 : vector<16x64xf32>
    %167 = arith.addf %160, %166 : vector<16x64xf32>
    %cst_70 = arith.constant 0.797884583 : f32
    %168 = vector.broadcast %cst_70 : f32 to vector<16x64xf32>
    %169 = arith.mulf %168, %167 : vector<16x64xf32>
    %170 = math.tanh %169 : vector<16x64xf32>
    %cst_71 = arith.constant 1.000000e+00 : f32
    %171 = vector.broadcast %cst_71 : f32 to vector<16x64xf32>
    %172 = arith.addf %171, %170 : vector<16x64xf32>
    %173 = arith.mulf %162, %172 : vector<16x64xf32>
    %174 = arith.truncf %173 : vector<16x64xf32> to vector<16x64xbf16>
    %cst_72 = arith.constant dense<0.000000e+00> : vector<16x32xf32>
    %175 = tpu.matmul %174, %54, %cst_72 {dimension_numbers = #tpu.dot_dimension_numbers<[1], [0], [0], [1], [0, 0, 1, 1], [], []>} : vector<16x64xbf16>, vector<64x32xbf16>, vector<16x32xf32> -> vector<16x32xf32>
    %176 = vector.broadcast %66 : vector<1x32xf32> to vector<16x32xf32>
    %177 = arith.addf %175, %176 : vector<16x32xf32>
    %178 = arith.addf %156, %177 : vector<16x32xf32>
    %cst_73 = arith.constant dense<0.000000e+00> : vector<16xf32>
    %179 = vector.multi_reduction <add>, %178, %cst_73 [1] : vector<16x32xf32> to vector<16xf32>
    %180 = vector.shape_cast %179 : vector<16xf32> to vector<16x1xf32>
    %cst_74 = arith.constant 3.200000e+01 : f32
    %181 = vector.broadcast %cst_74 : f32 to vector<16x1xf32>
    %182 = arith.divf %180, %181 : vector<16x1xf32>
    %183 = vector.broadcast %182 : vector<16x1xf32> to vector<16x32xf32>
    %184 = arith.subf %178, %183 : vector<16x32xf32>
    %185 = arith.mulf %184, %184 : vector<16x32xf32>
    %cst_75 = arith.constant dense<0.000000e+00> : vector<16xf32>
    %186 = vector.multi_reduction <add>, %185, %cst_75 [1] : vector<16x32xf32> to vector<16xf32>
    %187 = vector.shape_cast %186 : vector<16xf32> to vector<16x1xf32>
    %cst_76 = arith.constant 3.200000e+01 : f32
    %188 = vector.broadcast %cst_76 : f32 to vector<16x1xf32>
    %189 = arith.divf %187, %188 : vector<16x1xf32>
    %190 = vector.broadcast %182 : vector<16x1xf32> to vector<16x32xf32>
    %191 = arith.subf %178, %190 : vector<16x32xf32>
    %cst_77 = arith.constant 9.99999974E-6 : f32
    %192 = vector.broadcast %cst_77 : f32 to vector<16x1xf32>
    %193 = arith.addf %189, %192 : vector<16x1xf32>
    %194 = math.rsqrt %193 : vector<16x1xf32>
    %195 = vector.broadcast %194 : vector<16x1xf32> to vector<16x32xf32>
    %196 = arith.mulf %191, %195 : vector<16x32xf32>
    %197 = vector.broadcast %68 : vector<1x32xf32> to vector<16x32xf32>
    %198 = arith.mulf %196, %197 : vector<16x32xf32>
    %199 = vector.broadcast %70 : vector<1x32xf32> to vector<16x32xf32>
    %200 = arith.addf %198, %199 : vector<16x32xf32>
    %c1_78 = arith.constant 1 : index
    %c0_79 = arith.constant 0 : index
    %c0_80 = arith.constant 0 : index
    %201 = vector.load %arg3[%c1_78, %c0_79, %c0_80] : memref<2x32x192xbf16, #tpu.memory_space<vmem>>, vector<1x32x96xbf16>
    %202 = vector.shape_cast %201 : vector<1x32x96xbf16> to vector<32x96xbf16>
    %c1_81 = arith.constant 1 : index
    %c0_82 = arith.constant 0 : index
    %c96_83 = arith.constant 96 : index
    %203 = vector.load %arg3[%c1_81, %c0_82, %c96_83] : memref<2x32x192xbf16, #tpu.memory_space<vmem>>, vector<1x32x32xbf16>
    %204 = vector.shape_cast %203 : vector<1x32x32xbf16> to vector<32x32xbf16>
    %c1_84 = arith.constant 1 : index
    %c0_85 = arith.constant 0 : index
    %c128_86 = arith.constant 128 : index
    %205 = vector.load %arg3[%c1_84, %c0_85, %c128_86] : memref<2x32x192xbf16, #tpu.memory_space<vmem>>, vector<1x32x64xbf16>
    %206 = vector.shape_cast %205 : vector<1x32x64xbf16> to vector<32x64xbf16>
    %c1_87 = arith.constant 1 : index
    %c0_88 = arith.constant 0 : index
    %c0_89 = arith.constant 0 : index
    %207 = vector.load %arg4[%c1_87, %c0_88, %c0_89] : memref<2x64x32xbf16, #tpu.memory_space<vmem>>, vector<1x64x32xbf16>
    %208 = vector.shape_cast %207 : vector<1x64x32xbf16> to vector<64x32xbf16>
    %c1_90 = arith.constant 1 : index
    %c0_91 = arith.constant 0 : index
    %c0_92 = arith.constant 0 : index
    %209 = vector.load %arg5[%c1_90, %c0_91, %c0_92] : memref<2x8x128xf32, #tpu.memory_space<vmem>>, vector<1x1x96xf32>
    %210 = vector.shape_cast %209 : vector<1x1x96xf32> to vector<1x96xf32>
    %c1_93 = arith.constant 1 : index
    %c1_94 = arith.constant 1 : index
    %c0_95 = arith.constant 0 : index
    %211 = vector.load %arg5[%c1_93, %c1_94, %c0_95] : memref<2x8x128xf32, #tpu.memory_space<vmem>>, vector<1x1x32xf32>
    %212 = vector.shape_cast %211 : vector<1x1x32xf32> to vector<1x32xf32>
    %c1_96 = arith.constant 1 : index
    %c2_97 = arith.constant 2 : index
    %c0_98 = arith.constant 0 : index
    %213 = vector.load %arg5[%c1_96, %c2_97, %c0_98] : memref<2x8x128xf32, #tpu.memory_space<vmem>>, vector<1x1x32xf32>
    %214 = vector.shape_cast %213 : vector<1x1x32xf32> to vector<1x32xf32>
    %c1_99 = arith.constant 1 : index
    %c3_100 = arith.constant 3 : index
    %c0_101 = arith.constant 0 : index
    %215 = vector.load %arg5[%c1_99, %c3_100, %c0_101] : memref<2x8x128xf32, #tpu.memory_space<vmem>>, vector<1x1x32xf32>
    %216 = vector.shape_cast %215 : vector<1x1x32xf32> to vector<1x32xf32>
    %c1_102 = arith.constant 1 : index
    %c4_103 = arith.constant 4 : index
    %c0_104 = arith.constant 0 : index
    %217 = vector.load %arg5[%c1_102, %c4_103, %c0_104] : memref<2x8x128xf32, #tpu.memory_space<vmem>>, vector<1x1x64xf32>
    %218 = vector.shape_cast %217 : vector<1x1x64xf32> to vector<1x64xf32>
    %c1_105 = arith.constant 1 : index
    %c5_106 = arith.constant 5 : index
    %c0_107 = arith.constant 0 : index
    %219 = vector.load %arg5[%c1_105, %c5_106, %c0_107] : memref<2x8x128xf32, #tpu.memory_space<vmem>>, vector<1x1x32xf32>
    %220 = vector.shape_cast %219 : vector<1x1x32xf32> to vector<1x32xf32>
    %c1_108 = arith.constant 1 : index
    %c6_109 = arith.constant 6 : index
    %c0_110 = arith.constant 0 : index
    %221 = vector.load %arg5[%c1_108, %c6_109, %c0_110] : memref<2x8x128xf32, #tpu.memory_space<vmem>>, vector<1x1x32xf32>
    %222 = vector.shape_cast %221 : vector<1x1x32xf32> to vector<1x32xf32>
    %c1_111 = arith.constant 1 : index
    %c7_112 = arith.constant 7 : index
    %c0_113 = arith.constant 0 : index
    %223 = vector.load %arg5[%c1_111, %c7_112, %c0_113] : memref<2x8x128xf32, #tpu.memory_space<vmem>>, vector<1x1x32xf32>
    %224 = vector.shape_cast %223 : vector<1x1x32xf32> to vector<1x32xf32>
    %225 = arith.truncf %200 : vector<16x32xf32> to vector<16x32xbf16>
    %cst_114 = arith.constant dense<0.000000e+00> : vector<16x96xf32>
    %226 = tpu.matmul %225, %202, %cst_114 {dimension_numbers = #tpu.dot_dimension_numbers<[1], [0], [0], [1], [0, 0, 1, 1], [], []>} : vector<16x32xbf16>, vector<32x96xbf16>, vector<16x96xf32> -> vector<16x96xf32>
    %227 = vector.broadcast %210 : vector<1x96xf32> to vector<16x96xf32>
    %228 = arith.addf %226, %227 : vector<16x96xf32>
    %229 = vector.extract_strided_slice %228 {offsets = [0, 0], sizes = [16, 16], strides = [1, 1]} : vector<16x96xf32> to vector<16x16xf32>
    %230 = vector.shape_cast %229 : vector<16x16xf32> to vector<2x8x16xf32>
    %231 = arith.truncf %230 : vector<2x8x16xf32> to vector<2x8x16xbf16>
    %232 = vector.extract_strided_slice %228 {offsets = [0, 32], sizes = [16, 16], strides = [1, 1]} : vector<16x96xf32> to vector<16x16xf32>
    %233 = vector.shape_cast %232 : vector<16x16xf32> to vector<2x8x16xf32>
    %234 = arith.truncf %233 : vector<2x8x16xf32> to vector<2x8x16xbf16>
    %235 = vector.extract_strided_slice %228 {offsets = [0, 64], sizes = [16, 16], strides = [1, 1]} : vector<16x96xf32> to vector<16x16xf32>
    %236 = vector.shape_cast %235 : vector<16x16xf32> to vector<2x8x16xf32>
    %237 = arith.truncf %236 : vector<2x8x16xf32> to vector<2x8x16xbf16>
    "tpu.trace_start"() <{level = 10 : i32, message = "bqd,bkd->bqk"}> : () -> ()
    %cst_115 = arith.constant dense<0.000000e+00> : vector<2x8x8xf32>
    %238 = tpu.matmul %231, %234, %cst_115 {dimension_numbers = #tpu.dot_dimension_numbers<[2], [2], [1], [1], [0, 0, 0, 1, 1, 1], [0], [0]>} : vector<2x8x16xbf16>, vector<2x8x16xbf16>, vector<2x8x8xf32> -> vector<2x8x8xf32>
    "tpu.trace_stop"() : () -> ()
    %cst_116 = arith.constant 2.500000e-01 : f32
    %239 = vector.broadcast %cst_116 : f32 to vector<2x8x8xf32>
    %240 = arith.mulf %238, %239 : vector<2x8x8xf32>
    %241 = vector.broadcast %46 : vector<2x1x8xf32> to vector<2x8x8xf32>
    %242 = arith.addf %240, %241 : vector<2x8x8xf32>
    %cst_117 = arith.constant dense<0xFF800000> : vector<2x8xf32>
    %243 = vector.multi_reduction <maximumf>, %242, %cst_117 [2] : vector<2x8x8xf32> to vector<2x8xf32>
    %244 = vector.shape_cast %243 : vector<2x8xf32> to vector<2x8x1xf32>
    %245 = vector.broadcast %244 : vector<2x8x1xf32> to vector<2x8x8xf32>
    %246 = arith.subf %242, %245 : vector<2x8x8xf32>
    %247 = math.exp %246 : vector<2x8x8xf32>
    %cst_118 = arith.constant dense<0.000000e+00> : vector<2x8xf32>
    %248 = vector.multi_reduction <add>, %247, %cst_118 [2] : vector<2x8x8xf32> to vector<2x8xf32>
    %249 = vector.shape_cast %248 : vector<2x8xf32> to vector<2x8x1xf32>
    %250 = tpu.reciprocal %249 {approx = true} : vector<2x8x1xf32> -> vector<2x8x1xf32>
    %251 = vector.broadcast %250 : vector<2x8x1xf32> to vector<2x8x8xf32>
    %252 = arith.mulf %247, %251 : vector<2x8x8xf32>
    %253 = arith.truncf %252 : vector<2x8x8xf32> to vector<2x8x8xbf16>
    "tpu.trace_start"() <{level = 10 : i32, message = "bqk,bkd->bqd"}> : () -> ()
    %cst_119 = arith.constant dense<0.000000e+00> : vector<2x8x16xf32>
    %254 = tpu.matmul %253, %237, %cst_119 {dimension_numbers = #tpu.dot_dimension_numbers<[2], [1], [1], [2], [0, 0, 0, 1, 1, 2], [0], [0]>} : vector<2x8x8xbf16>, vector<2x8x16xbf16>, vector<2x8x16xf32> -> vector<2x8x16xf32>
    "tpu.trace_stop"() : () -> ()
    %255 = vector.shape_cast %254 : vector<2x8x16xf32> to vector<16x16xf32>
    %256 = vector.extract_strided_slice %228 {offsets = [0, 16], sizes = [16, 16], strides = [1, 1]} : vector<16x96xf32> to vector<16x16xf32>
    %257 = vector.shape_cast %256 : vector<16x16xf32> to vector<2x8x16xf32>
    %258 = arith.truncf %257 : vector<2x8x16xf32> to vector<2x8x16xbf16>
    %259 = vector.extract_strided_slice %228 {offsets = [0, 48], sizes = [16, 16], strides = [1, 1]} : vector<16x96xf32> to vector<16x16xf32>
    %260 = vector.shape_cast %259 : vector<16x16xf32> to vector<2x8x16xf32>
    %261 = arith.truncf %260 : vector<2x8x16xf32> to vector<2x8x16xbf16>
    %262 = vector.extract_strided_slice %228 {offsets = [0, 80], sizes = [16, 16], strides = [1, 1]} : vector<16x96xf32> to vector<16x16xf32>
    %263 = vector.shape_cast %262 : vector<16x16xf32> to vector<2x8x16xf32>
    %264 = arith.truncf %263 : vector<2x8x16xf32> to vector<2x8x16xbf16>
    "tpu.trace_start"() <{level = 10 : i32, message = "bqd,bkd->bqk"}> : () -> ()
    %cst_120 = arith.constant dense<0.000000e+00> : vector<2x8x8xf32>
    %265 = tpu.matmul %258, %261, %cst_120 {dimension_numbers = #tpu.dot_dimension_numbers<[2], [2], [1], [1], [0, 0, 0, 1, 1, 1], [0], [0]>} : vector<2x8x16xbf16>, vector<2x8x16xbf16>, vector<2x8x8xf32> -> vector<2x8x8xf32>
    "tpu.trace_stop"() : () -> ()
    %cst_121 = arith.constant 2.500000e-01 : f32
    %266 = vector.broadcast %cst_121 : f32 to vector<2x8x8xf32>
    %267 = arith.mulf %265, %266 : vector<2x8x8xf32>
    %268 = vector.broadcast %46 : vector<2x1x8xf32> to vector<2x8x8xf32>
    %269 = arith.addf %267, %268 : vector<2x8x8xf32>
    %cst_122 = arith.constant dense<0xFF800000> : vector<2x8xf32>
    %270 = vector.multi_reduction <maximumf>, %269, %cst_122 [2] : vector<2x8x8xf32> to vector<2x8xf32>
    %271 = vector.shape_cast %270 : vector<2x8xf32> to vector<2x8x1xf32>
    %272 = vector.broadcast %271 : vector<2x8x1xf32> to vector<2x8x8xf32>
    %273 = arith.subf %269, %272 : vector<2x8x8xf32>
    %274 = math.exp %273 : vector<2x8x8xf32>
    %cst_123 = arith.constant dense<0.000000e+00> : vector<2x8xf32>
    %275 = vector.multi_reduction <add>, %274, %cst_123 [2] : vector<2x8x8xf32> to vector<2x8xf32>
    %276 = vector.shape_cast %275 : vector<2x8xf32> to vector<2x8x1xf32>
    %277 = tpu.reciprocal %276 {approx = true} : vector<2x8x1xf32> -> vector<2x8x1xf32>
    %278 = vector.broadcast %277 : vector<2x8x1xf32> to vector<2x8x8xf32>
    %279 = arith.mulf %274, %278 : vector<2x8x8xf32>
    %280 = arith.truncf %279 : vector<2x8x8xf32> to vector<2x8x8xbf16>
    "tpu.trace_start"() <{level = 10 : i32, message = "bqk,bkd->bqd"}> : () -> ()
    %cst_124 = arith.constant dense<0.000000e+00> : vector<2x8x16xf32>
    %281 = tpu.matmul %280, %264, %cst_124 {dimension_numbers = #tpu.dot_dimension_numbers<[2], [1], [1], [2], [0, 0, 0, 1, 1, 2], [0], [0]>} : vector<2x8x8xbf16>, vector<2x8x16xbf16>, vector<2x8x16xf32> -> vector<2x8x16xf32>
    "tpu.trace_stop"() : () -> ()
    %282 = vector.shape_cast %281 : vector<2x8x16xf32> to vector<16x16xf32>
    %283 = tpu.concatenate %255, %282 in 1 : vector<16x16xf32>, vector<16x16xf32> -> vector<16x32xf32>
    %284 = arith.truncf %283 : vector<16x32xf32> to vector<16x32xbf16>
    %cst_125 = arith.constant dense<0.000000e+00> : vector<16x32xf32>
    %285 = tpu.matmul %284, %204, %cst_125 {dimension_numbers = #tpu.dot_dimension_numbers<[1], [0], [0], [1], [0, 0, 1, 1], [], []>} : vector<16x32xbf16>, vector<32x32xbf16>, vector<16x32xf32> -> vector<16x32xf32>
    %286 = vector.broadcast %212 : vector<1x32xf32> to vector<16x32xf32>
    %287 = arith.addf %285, %286 : vector<16x32xf32>
    %288 = arith.addf %200, %287 : vector<16x32xf32>
    %cst_126 = arith.constant dense<0.000000e+00> : vector<16xf32>
    %289 = vector.multi_reduction <add>, %288, %cst_126 [1] : vector<16x32xf32> to vector<16xf32>
    %290 = vector.shape_cast %289 : vector<16xf32> to vector<16x1xf32>
    %cst_127 = arith.constant 3.200000e+01 : f32
    %291 = vector.broadcast %cst_127 : f32 to vector<16x1xf32>
    %292 = arith.divf %290, %291 : vector<16x1xf32>
    %293 = vector.broadcast %292 : vector<16x1xf32> to vector<16x32xf32>
    %294 = arith.subf %288, %293 : vector<16x32xf32>
    %295 = arith.mulf %294, %294 : vector<16x32xf32>
    %cst_128 = arith.constant dense<0.000000e+00> : vector<16xf32>
    %296 = vector.multi_reduction <add>, %295, %cst_128 [1] : vector<16x32xf32> to vector<16xf32>
    %297 = vector.shape_cast %296 : vector<16xf32> to vector<16x1xf32>
    %cst_129 = arith.constant 3.200000e+01 : f32
    %298 = vector.broadcast %cst_129 : f32 to vector<16x1xf32>
    %299 = arith.divf %297, %298 : vector<16x1xf32>
    %300 = vector.broadcast %292 : vector<16x1xf32> to vector<16x32xf32>
    %301 = arith.subf %288, %300 : vector<16x32xf32>
    %cst_130 = arith.constant 9.99999974E-6 : f32
    %302 = vector.broadcast %cst_130 : f32 to vector<16x1xf32>
    %303 = arith.addf %299, %302 : vector<16x1xf32>
    %304 = math.rsqrt %303 : vector<16x1xf32>
    %305 = vector.broadcast %304 : vector<16x1xf32> to vector<16x32xf32>
    %306 = arith.mulf %301, %305 : vector<16x32xf32>
    %307 = vector.broadcast %214 : vector<1x32xf32> to vector<16x32xf32>
    %308 = arith.mulf %306, %307 : vector<16x32xf32>
    %309 = vector.broadcast %216 : vector<1x32xf32> to vector<16x32xf32>
    %310 = arith.addf %308, %309 : vector<16x32xf32>
    %311 = arith.truncf %310 : vector<16x32xf32> to vector<16x32xbf16>
    %cst_131 = arith.constant dense<0.000000e+00> : vector<16x64xf32>
    %312 = tpu.matmul %311, %206, %cst_131 {dimension_numbers = #tpu.dot_dimension_numbers<[1], [0], [0], [1], [0, 0, 1, 1], [], []>} : vector<16x32xbf16>, vector<32x64xbf16>, vector<16x64xf32> -> vector<16x64xf32>
    %313 = vector.broadcast %218 : vector<1x64xf32> to vector<16x64xf32>
    %314 = arith.addf %312, %313 : vector<16x64xf32>
    %cst_132 = arith.constant 5.000000e-01 : f32
    %315 = vector.broadcast %cst_132 : f32 to vector<16x64xf32>
    %316 = arith.mulf %315, %314 : vector<16x64xf32>
    %cst_133 = arith.constant 4.471500e-02 : f32
    %317 = vector.broadcast %cst_133 : f32 to vector<16x64xf32>
    %318 = arith.mulf %317, %314 : vector<16x64xf32>
    %319 = arith.mulf %318, %314 : vector<16x64xf32>
    %320 = arith.mulf %319, %314 : vector<16x64xf32>
    %321 = arith.addf %314, %320 : vector<16x64xf32>
    %cst_134 = arith.constant 0.797884583 : f32
    %322 = vector.broadcast %cst_134 : f32 to vector<16x64xf32>
    %323 = arith.mulf %322, %321 : vector<16x64xf32>
    %324 = math.tanh %323 : vector<16x64xf32>
    %cst_135 = arith.constant 1.000000e+00 : f32
    %325 = vector.broadcast %cst_135 : f32 to vector<16x64xf32>
    %326 = arith.addf %325, %324 : vector<16x64xf32>
    %327 = arith.mulf %316, %326 : vector<16x64xf32>
    %328 = arith.truncf %327 : vector<16x64xf32> to vector<16x64xbf16>
    %cst_136 = arith.constant dense<0.000000e+00> : vector<16x32xf32>
    %329 = tpu.matmul %328, %208, %cst_136 {dimension_numbers = #tpu.dot_dimension_numbers<[1], [0], [0], [1], [0, 0, 1, 1], [], []>} : vector<16x64xbf16>, vector<64x32xbf16>, vector<16x32xf32> -> vector<16x32xf32>
    %330 = vector.broadcast %220 : vector<1x32xf32> to vector<16x32xf32>
    %331 = arith.addf %329, %330 : vector<16x32xf32>
    %332 = arith.addf %310, %331 : vector<16x32xf32>
    %cst_137 = arith.constant dense<0.000000e+00> : vector<16xf32>
    %333 = vector.multi_reduction <add>, %332, %cst_137 [1] : vector<16x32xf32> to vector<16xf32>
    %334 = vector.shape_cast %333 : vector<16xf32> to vector<16x1xf32>
    %cst_138 = arith.constant 3.200000e+01 : f32
    %335 = vector.broadcast %cst_138 : f32 to vector<16x1xf32>
    %336 = arith.divf %334, %335 : vector<16x1xf32>
    %337 = vector.broadcast %336 : vector<16x1xf32> to vector<16x32xf32>
    %338 = arith.subf %332, %337 : vector<16x32xf32>
    %339 = arith.mulf %338, %338 : vector<16x32xf32>
    %cst_139 = arith.constant dense<0.000000e+00> : vector<16xf32>
    %340 = vector.multi_reduction <add>, %339, %cst_139 [1] : vector<16x32xf32> to vector<16xf32>
    %341 = vector.shape_cast %340 : vector<16xf32> to vector<16x1xf32>
    %cst_140 = arith.constant 3.200000e+01 : f32
    %342 = vector.broadcast %cst_140 : f32 to vector<16x1xf32>
    %343 = arith.divf %341, %342 : vector<16x1xf32>
    %344 = vector.broadcast %336 : vector<16x1xf32> to vector<16x32xf32>
    %345 = arith.subf %332, %344 : vector<16x32xf32>
    %cst_141 = arith.constant 9.99999974E-6 : f32
    %346 = vector.broadcast %cst_141 : f32 to vector<16x1xf32>
    %347 = arith.addf %343, %346 : vector<16x1xf32>
    %348 = math.rsqrt %347 : vector<16x1xf32>
    %349 = vector.broadcast %348 : vector<16x1xf32> to vector<16x32xf32>
    %350 = arith.mulf %345, %349 : vector<16x32xf32>
    %351 = vector.broadcast %222 : vector<1x32xf32> to vector<16x32xf32>
    %352 = arith.mulf %350, %351 : vector<16x32xf32>
    %353 = vector.broadcast %224 : vector<1x32xf32> to vector<16x32xf32>
    %354 = arith.addf %352, %353 : vector<16x32xf32>
    %355 = vector.shape_cast %354 : vector<16x32xf32> to vector<2x8x32xf32>
    %356 = vector.extract_strided_slice %355 {offsets = [0, 0, 0], sizes = [2, 1, 32], strides = [1, 1, 1]} : vector<2x8x32xf32> to vector<2x1x32xf32>
    %357 = vector.shape_cast %356 : vector<2x1x32xf32> to vector<2x32xf32>
    %c0_142 = arith.constant 0 : index
    %c128_143 = arith.constant 128 : index
    %358 = vector.load %arg6[%c0_142, %c128_143] : memref<32x160xbf16, #tpu.memory_space<vmem>>, vector<32x32xbf16>
    %359 = arith.truncf %357 : vector<2x32xf32> to vector<2x32xbf16>
    %cst_144 = arith.constant dense<0.000000e+00> : vector<2x32xf32>
    %360 = tpu.matmul %359, %358, %cst_144 {dimension_numbers = #tpu.dot_dimension_numbers<[1], [0], [0], [1], [0, 0, 1, 1], [], []>} : vector<2x32xbf16>, vector<32x32xbf16>, vector<2x32xf32> -> vector<2x32xf32>
    %c2_145 = arith.constant 2 : index
    %c0_146 = arith.constant 0 : index
    %361 = vector.load %arg7[%c2_145, %c0_146] : memref<4x128xf32, #tpu.memory_space<vmem>>, vector<1x32xf32>
    %362 = vector.broadcast %361 : vector<1x32xf32> to vector<2x32xf32>
    %363 = arith.addf %360, %362 : vector<2x32xf32>
    %364 = math.tanh %363 : vector<2x32xf32>
    %c0_147 = arith.constant 0 : index
    %c0_148 = arith.constant 0 : index
    %365 = vector.load %arg6[%c0_147, %c0_148] : memref<32x160xbf16, #tpu.memory_space<vmem>>, vector<32x128xbf16>
    %366 = arith.truncf %364 : vector<2x32xf32> to vector<2x32xbf16>
    %cst_149 = arith.constant dense<0.000000e+00> : vector<2x128xf32>
    %367 = tpu.matmul %366, %365, %cst_149 {dimension_numbers = #tpu.dot_dimension_numbers<[1], [0], [0], [1], [0, 0, 1, 1], [], []>} : vector<2x32xbf16>, vector<32x128xbf16>, vector<2x128xf32> -> vector<2x128xf32>
    %c3_150 = arith.constant 3 : index
    %c0_151 = arith.constant 0 : index
    %368 = vector.load %arg7[%c3_150, %c0_151] : memref<4x128xf32, #tpu.memory_space<vmem>>, vector<1x128xf32>
    %369 = vector.broadcast %368 : vector<1x128xf32> to vector<2x128xf32>
    %370 = arith.addf %367, %369 : vector<2x128xf32>
    %c0_152 = arith.constant 0 : index
    %c0_153 = arith.constant 0 : index
    %371 = vector.load %arg8[%c0_152, %c0_153] : memref<2x128xf32, #tpu.memory_space<vmem>>, vector<2x128xf32>
    tpu.vector_store %arg8[%c0_152, %c0_153], %370 {strides = array<i32>} : memref<2x128xf32, #tpu.memory_space<vmem>>, vector<2x128xf32>,
    return
  }
}

</mosaic_0001>

<llo_original>
// kernel: phobert_classifier_forward.1
$region0: #{phobert_classifier_forward.1}
  #allocation0 [shape = 'u32[]', space=smem, size = 0x4, offset = 0x4, fixed_abs, tag = 'smem constant byte address 0x4 - core index']
  #allocation1 [shape = 'u32[144,128]{1,0:T(1,128)}', space=vmem, size = 0x12000, scoped, tag = 'internal scratch']
  %s0 = inlined_call_operand.vmem [shape: s32[16,2], index: 0, kind: input, shape index: {}]
  %s1 = inlined_call_operand.vmem [shape: f32[2,1,8], index: 1, kind: input, shape index: {}]
  %s2 = inlined_call_operand.vmem [shape: bf16[256,32], index: 2, kind: input, shape index: {}]
  %s3 = inlined_call_operand.vmem [shape: bf16[2,32,192], index: 3, kind: input, shape index: {}]
  %s4 = inlined_call_operand.vmem [shape: bf16[2,64,32], index: 4, kind: input, shape index: {}]
  %s5 = inlined_call_operand.vmem [shape: f32[2,8,128], index: 5, kind: input, shape index: {}]
  %s6 = inlined_call_operand.vmem [shape: bf16[32,160], index: 6, kind: input, shape index: {}]
  %s7 = inlined_call_operand.vmem [shape: f32[4,128], index: 7, kind: input, shape index: {}]
  %s8 = inlined_call_operand.hbm [shape: f32[2,128], index: 8, kind: output, shape index: {}]
  %s9 = sld [smem:[#allocation0]]
  $region42: #{phobert_classifier_forward.1} parent=0
    _
  %s11 = ssub.s32 1, %s9
  %s12 = scalar_select 0, %s11, %s9
  $region1: #{phobert_classifier_forward.1} parent=0
    #allocation2 [shape = 'u8[1024]{0}', space=vmem, size = 0x400, scoped, tag = 'output window, operand 0, single buffered']
    #allocation3 [shape = 's32[1]{0}', space=sflag, size = 0x4, scoped, tag = 'scoped memory for phobert_classifier_forward.1']
    %13 = vsyncpa [#allocation3], 0
    // Predicated region
    $region2: #{phobert_classifier_forward.1} parent=1 // pred_check
      _
    $region3: #{phobert_classifier_forward.1} parent=1 // pred_check_branch
      %15 = sbr.rel (0) target = $region5
    $region4: #{phobert_classifier_forward.1} parent=1 // pred_region
      _
    $region5: #{phobert_classifier_forward.1} parent=1 // pred_fallthru
      _
    // Predicated region
    $region6: #{phobert_classifier_forward.1} parent=1 // pred_check
      _
    $region7: #{phobert_classifier_forward.1} parent=1 // pred_check_branch
      %17 = sbr.rel (0) target = $region9
    $region8: #{phobert_classifier_forward.1} parent=1 // pred_region
      _
    $region9: #{phobert_classifier_forward.1} parent=1 // pred_fallthru
      _
    // Predicated region
    $region10: #{phobert_classifier_forward.1} parent=1 // pred_check
      _
    $region11: #{phobert_classifier_forward.1} parent=1 // pred_check_branch
      %19 = sbr.rel (0) target = $region13
    $region12: #{phobert_classifier_forward.1} parent=1 // pred_region
      _
    $region13: #{phobert_classifier_forward.1} parent=1 // pred_fallthru
      _
    // Predicated region
    $region14: #{phobert_classifier_forward.1} parent=1 // pred_check
      _
    $region15: #{phobert_classifier_forward.1} parent=1 // pred_check_branch
      %21 = sbr.rel (0) target = $region17
    $region16: #{phobert_classifier_forward.1} parent=1 // pred_region
      _
    $region17: #{phobert_classifier_forward.1} parent=1 // pred_fallthru
      _
    // Predicated region
    $region18: #{phobert_classifier_forward.1} parent=1 // pred_check
      _
    $region19: #{phobert_classifier_forward.1} parent=1 // pred_check_branch
      %23 = sbr.rel (0) target = $region21
    $region20: #{phobert_classifier_forward.1} parent=1 // pred_region
      _
    $region21: #{phobert_classifier_forward.1} parent=1 // pred_fallthru
      _
    // Predicated region
    $region22: #{phobert_classifier_forward.1} parent=1 // pred_check
      _
    $region23: #{phobert_classifier_forward.1} parent=1 // pred_check_branch
      %25 = sbr.rel (0) target = $region25
    $region24: #{phobert_classifier_forward.1} parent=1 // pred_region
      _
    $region25: #{phobert_classifier_forward.1} parent=1 // pred_fallthru
      _
    // Predicated region
    $region26: #{phobert_classifier_forward.1} parent=1 // pred_check
      _
    $region27: #{phobert_classifier_forward.1} parent=1 // pred_check_branch
      %27 = sbr.rel (0) target = $region29
    $region28: #{phobert_classifier_forward.1} parent=1 // pred_region
      _
    $region29: #{phobert_classifier_forward.1} parent=1 // pred_fallthru
      _
    // Predicated region
    $region30: #{phobert_classifier_forward.1} parent=1 // pred_check
      _
    $region31: #{phobert_classifier_forward.1} parent=1 // pred_check_branch
      %29 = sbr.rel (0) target = $region33
    $region32: #{phobert_classifier_forward.1} parent=1 // pred_region
      _
    $region33: #{phobert_classifier_forward.1} parent=1 // pred_fallthru
      _
    %v31 = vlaneseq
    %v32 = vand.u32 %v31, 127
    %v33 = vld [vmem:[%s0] sm:$0xff]
    %v34 = vld [vmem:[%s0 + $0x8] sm:$0xff]
    %35 = vset.pattern.permute.xlu0 0
    %36 = vperm.xlu0 %35, %v33
    %v37 = vpop.permute.xlu0 %36
    %38 = vset.pattern.permute.xlu0 0
    %39 = vperm.xlu0 %38, %v34
    %v40 = vpop.permute.xlu0 %39
    %vm41 = vcmp.eq.s32.totalorder %v32, %v37
    %vm42 = vcmp.eq.s32.totalorder %v32, %v40
    %v43 = vsel %vm41, 1.0, 0.0
    %v44 = vsel %vm42, 1.0, 0.0
    %v45 = vpack.c.bf16 %v44, %v43
    %46 = vset.pattern.permute.xlu0 1
    %47 = vperm.xlu0 %46, %v33
    %v48 = vpop.permute.xlu0 %47
    %49 = vset.pattern.permute.xlu0 1
    %50 = vperm.xlu0 %49, %v34
    %v51 = vpop.permute.xlu0 %50
    %vm52 = vcmp.eq.s32.totalorder %v32, %v48
    %vm53 = vcmp.eq.s32.totalorder %v32, %v51
    %v54 = vsel %vm52, 1.0, 0.0
    %v55 = vsel %vm53, 1.0, 0.0
    %v56 = vpack.c.bf16 %v55, %v54
    %v57 = vld [vmem:[%s2] sm:$0xf]
    %v58 = vld [vmem:[%s2 + $0x4] sm:$0xf]
    %v59 = vld [vmem:[%s2 + $0x8] sm:$0xf]
    %v60 = vld [vmem:[%s2 + $0xc] sm:$0xf]
    %v61 = vld [vmem:[%s2 + $0x10] sm:$0xf]
    %v62 = vld [vmem:[%s2 + $0x14] sm:$0xf]
    %v63 = vld [vmem:[%s2 + $0x18] sm:$0xf]
    %v64 = vld [vmem:[%s2 + $0x1c] sm:$0xf]
    %v65 = vld [vmem:[%s2 + $0x20] sm:$0xf]
    %v66 = vld [vmem:[%s2 + $0x24] sm:$0xf]
    %v67 = vld [vmem:[%s2 + $0x28] sm:$0xf]
    %v68 = vld [vmem:[%s2 + $0x2c] sm:$0xf]
    %v69 = vld [vmem:[%s2 + $0x30] sm:$0xf]
    %v70 = vld [vmem:[%s2 + $0x34] sm:$0xf]
    %v71 = vld [vmem:[%s2 + $0x38] sm:$0xf]
    %v72 = vld [vmem:[%s2 + $0x3c] sm:$0xf]
    %v73 = vld [vmem:[%s2 + $0x40] sm:$0xf]
    %v74 = vld [vmem:[%s2 + $0x44] sm:$0xf]
    %v75 = vld [vmem:[%s2 + $0x48] sm:$0xf]
    %v76 = vld [vmem:[%s2 + $0x4c] sm:$0xf]
    %v77 = vld [vmem:[%s2 + $0x50] sm:$0xf]
    %v78 = vld [vmem:[%s2 + $0x54] sm:$0xf]
    %v79 = vld [vmem:[%s2 + $0x58] sm:$0xf]
    %v80 = vld [vmem:[%s2 + $0x5c] sm:$0xf]
    %v81 = vld [vmem:[%s2 + $0x60] sm:$0xf]
    %v82 = vld [vmem:[%s2 + $0x64] sm:$0xf]
    %v83 = vld [vmem:[%s2 + $0x68] sm:$0xf]
    %v84 = vld [vmem:[%s2 + $0x6c] sm:$0xf]
    %v85 = vld [vmem:[%s2 + $0x70] sm:$0xf]
    %v86 = vld [vmem:[%s2 + $0x74] sm:$0xf]
    %v87 = vld [vmem:[%s2 + $0x78] sm:$0xf]
    %v88 = vld [vmem:[%s2 + $0x7c] sm:$0xf]
    %v121 = vunpack.c.l.b16 %v57
    %v122 = vunpack.c.l.b16 %v58
    %v123 = vunpack.c.l.b16 %v59
    %v124 = vunpack.c.l.b16 %v60
    %v125 = vunpack.c.l.b16 %v61
    %v126 = vunpack.c.l.b16 %v62
    %v127 = vunpack.c.l.b16 %v63
    %v128 = vunpack.c.l.b16 %v64
    %v129 = vunpack.c.l.b16 %v65
    %v130 = vunpack.c.l.b16 %v66
    %v131 = vunpack.c.l.b16 %v67
    %v132 = vunpack.c.l.b16 %v68
    %v133 = vunpack.c.l.b16 %v69
    %v134 = vunpack.c.l.b16 %v70
    %v135 = vunpack.c.l.b16 %v71
    %v136 = vunpack.c.l.b16 %v72
    %v137 = vunpack.c.l.b16 %v73
    %v138 = vunpack.c.l.b16 %v74
    %v139 = vunpack.c.l.b16 %v75
    %v140 = vunpack.c.l.b16 %v76
    %v141 = vunpack.c.l.b16 %v77
    %v142 = vunpack.c.l.b16 %v78
    %v143 = vunpack.c.l.b16 %v79
    %v144 = vunpack.c.l.b16 %v80
    %v145 = vunpack.c.l.b16 %v81
    %v146 = vunpack.c.l.b16 %v82
    %v147 = vunpack.c.l.b16 %v83
    %v148 = vunpack.c.l.b16 %v84
    %v149 = vunpack.c.l.b16 %v85
    %v150 = vunpack.c.l.b16 %v86
    %v151 = vunpack.c.l.b16 %v87
    %v152 = vunpack.c.l.b16 %v88
    %v153 = vpack.c.b16 %v122, %v121
    %v154 = vpack.c.b16 %v124, %v123
    %v155 = vpack.c.b16 %v126, %v125
    %v156 = vpack.c.b16 %v128, %v127
    %v157 = vpack.c.b16 %v130, %v129
    %v158 = vpack.c.b16 %v132, %v131
    %v159 = vpack.c.b16 %v134, %v133
    %v160 = vpack.c.b16 %v136, %v135
    %v161 = vpack.c.b16 %v138, %v137
    %v162 = vpack.c.b16 %v140, %v139
    %v163 = vpack.c.b16 %v142, %v141
    %v164 = vpack.c.b16 %v144, %v143
    %v165 = vpack.c.b16 %v146, %v145
    %v166 = vpack.c.b16 %v148, %v147
    %v167 = vpack.c.b16 %v150, %v149
    %v168 = vpack.c.b16 %v152, %v151
    %185 = vmatprep.subr.bf16.mxu0 0
    %186 = vmatpush1.bf16.msra.mxu0 %v160
    %187 = vmatprep.subr.bf16.mxu0 0
    %188 = vmatpush1.bf16.msra.mxu0 %v159
    %189 = vmatprep.subr.bf16.mxu0 0
    %190 = vmatpush1.bf16.msra.mxu0 %v158
    %191 = vmatprep.subr.bf16.mxu0 0
    %192 = vmatpush1.bf16.msra.mxu0 %v157
    %193 = vmatprep.subr.bf16.mxu0 0
    %194 = vmatpush1.bf16.msra.mxu0 %v156
    %195 = vmatprep.subr.bf16.mxu0 0
    %196 = vmatpush1.bf16.msra.mxu0 %v155
    %197 = vmatprep.subr.bf16.mxu0 0
    %198 = vmatpush1.bf16.msra.mxu0 %v154
    %199 = vmatprep.subr.bf16.mxu0 0
    %200 = vmatpush1.bf16.msra.mxu0 %v153
    %201 = vmatprep.subr.bf16.mxu0 0
    %202 = vmatpush2.bf16.msra.mxu0 %v168
    %203 = vmatprep.subr.bf16.mxu0 0
    %204 = vmatpush2.bf16.msra.mxu0 %v167
    %205 = vmatprep.subr.bf16.mxu0 0
    %206 = vmatpush2.bf16.msra.mxu0 %v166
    %207 = vmatprep.subr.bf16.mxu0 0
    %208 = vmatpush2.bf16.msra.mxu0 %v165
    %209 = vmatprep.subr.bf16.mxu0 0
    %210 = vmatpush2.bf16.msra.mxu0 %v164
    %211 = vmatprep.subr.bf16.mxu0 0
    %212 = vmatpush2.bf16.msra.mxu0 %v163
    %213 = vmatprep.subr.bf16.mxu0 0
    %214 = vmatpush2.bf16.msra.mxu0 %v162
    %215 = vmatprep.subr.bf16.mxu0 0
    %216 = vmatpush2.bf16.msra.mxu0 %v161
    %217 = vmatprep.mubr.bf16.mxu0 %v56
    %218 = vmatmul.mubr.bf16.gmra.mxu0 %v45
    %v219 = vpop.f32.mrf.mxu0
    %v220 = vadd.f32 0.0, %v219
    %v221 = vpop.f32.mrf.mxu0
    %v222 = vpop.f32.mrf.mxu0
    %v223 = vadd.f32 0.0, %v222
    %v224 = vpop.f32.mrf.mxu0
    %225 = vdwg.mxu0
    %v226 = vld [vmem:[%s7] sm:$0x1]
    %v227 = vld [vmem:[%s7 + $0x1] sm:$0x1]
    %vm228 = vcmask 261120
    %v229 = vsel %vm228, %v220, 0.0
    %230 = vadd.xlane.f32.xlu0 %v229
    %v231 = vpop.xlane.xlu0 %230
    %v232 = vsel %vm228, %v223, 0.0
    %233 = vadd.xlane.f32.xlu0 %v232
    %v234 = vpop.xlane.xlu0 %233
    %v235 = vrcp.pop 32.0
    %v236 = vmul.f32 %v231, %v235
    %v237 = vmul.f32 %v234, %v235
    %v238 = vsub.f32 %v220, %v236
    %v239 = vsub.f32 %v223, %v237
    %v240 = vmul.f32 %v238, %v238
    %v241 = vmul.f32 %v239, %v239
    %v242 = vsel %vm228, %v240, 0.0
    %243 = vadd.xlane.f32.xlu0 %v242
    %v244 = vpop.xlane.xlu0 %243
    %v245 = vsel %vm228, %v241, 0.0
    %246 = vadd.xlane.f32.xlu0 %v245
    %v247 = vpop.xlane.xlu0 %246
    %v248 = vmul.f32 %v244, %v235
    %v249 = vmul.f32 %v247, %v235
    %v250 = vadd.f32 %v248, 1e-05
    %v251 = vadd.f32 %v249, 1e-05
    %v252 = vrsqrt.pop %v250
    %v253 = vrsqrt.pop %v251
    %v254 = vmul.f32 %v238, %v252
    %v255 = vmul.f32 %v239, %v253
    %v256 = vlaneseq
    %v257 = vshrl.u32 %v256, 7
    %v258 = vsub.s32 0, %v257
    %v259 = vrot.slane %v226, %v258
    %v260 = vmul.f32 %v254, %v259
    %v261 = vmul.f32 %v255, %v259
    %v262 = vlaneseq
    %v263 = vshrl.u32 %v262, 7
    %v264 = vsub.s32 0, %v263
    %v265 = vrot.slane %v227, %v264
    %v266 = vadd.f32 %v260, %v265
    %v267 = vadd.f32 %v261, %v265
    %v268 = vld [vmem:[%s1] sm:$0x1]
    %v269 = vld [vmem:[%s1 + $0x1] sm:$0x1]
    %v270 = vsub.f32 1.0, %v268
    %v271 = vsub.f32 1.0, %v269
    %v272 = vmul.f32 %v270, -1e+09
    %v273 = vmul.f32 %v271, -1e+09
    %v274 = vld [vmem:[%s3] sm:$0xf]
    %v275 = vld [vmem:[%s3 + $0x8] sm:$0xf]
    %v276 = vld [vmem:[%s3 + $0x10] sm:$0xf]
    %v277 = vld [vmem:[%s3 + $0x18] sm:$0xf]
    %v278 = vld [vmem:[%s3 + $0x4] sm:$0xf]
    %v279 = vld [vmem:[%s3 + $0xc] sm:$0xf]
    %v280 = vld [vmem:[%s3 + $0x14] sm:$0xf]
    %v281 = vld [vmem:[%s3 + $0x1c] sm:$0xf]
    %v282 = vld [vmem:[%s4] sm:$0xf]
    %v283 = vld [vmem:[%s4 + $0x4] sm:$0xf]
    %v284 = vld [vmem:[%s4 + $0x8] sm:$0xf]
    %v285 = vld [vmem:[%s4 + $0xc] sm:$0xf]
    %v286 = vld [vmem:[%s4 + $0x10] sm:$0xf]
    %v287 = vld [vmem:[%s4 + $0x14] sm:$0xf]
    %v288 = vld [vmem:[%s4 + $0x18] sm:$0xf]
    %v289 = vld [vmem:[%s4 + $0x1c] sm:$0xf]
    %v290 = vld [vmem:[%s5] sm:$0x1]
    %v291 = vld [vmem:[%s5 + $0x1] sm:$0x1]
    %v292 = vld [vmem:[%s5 + $0x2] sm:$0x1]
    %v293 = vld [vmem:[%s5 + $0x3] sm:$0x1]
    %v294 = vld [vmem:[%s5 + $0x4] sm:$0x1]
    %v295 = vld [vmem:[%s5 + $0x5] sm:$0x1]
    %v296 = vld [vmem:[%s5 + $0x6] sm:$0x1]
    %v297 = vld [vmem:[%s5 + $0x7] sm:$0x1]
    %v298 = vpack.c.bf16 %v267, %v266
    %v299 = vlaneseq
    %v300 = vshrl.u32 %v299, 7
    %v301 = vsub.s32 0, %v300
    %v302 = vrot.slane %v290, %v301
    %v307 = vunpack.c.l.b16 %v274
    %v308 = vunpack.c.l.b16 %v275
    %v309 = vunpack.c.l.b16 %v276
    %v310 = vunpack.c.l.b16 %v277
    %v311 = vpack.c.b16 %v308, %v307
    %v312 = vpack.c.b16 %v310, %v309
    %v316 = vsel %vm228, %v298, 0
    %318 = vmatprep.subr.bf16.mxu0 0
    %319 = vmatpush1.bf16.msra.mxu0 0
    %320 = vmatprep.subr.bf16.mxu0 0
    %321 = vmatpush1.bf16.msra.mxu0 0
    %322 = vmatprep.subr.bf16.mxu0 0
    %323 = vmatpush1.bf16.msra.mxu0 0
    %324 = vmatprep.subr.bf16.mxu0 0
    %325 = vmatpush1.bf16.msra.mxu0 0
    %326 = vmatprep.subr.bf16.mxu0 0
    %327 = vmatpush1.bf16.msra.mxu0 0
    %328 = vmatprep.subr.bf16.mxu0 0
    %329 = vmatpush1.bf16.msra.mxu0 0
    %330 = vmatprep.subr.bf16.mxu0 0
    %331 = vmatpush1.bf16.msra.mxu0 %v312
    %332 = vmatprep.subr.bf16.mxu0 0
    %333 = vmatpush1.bf16.msra.mxu0 %v311
    %334 = vmatprep.subr.bf16.mxu0 0
    %335 = vmatpush2.bf16.msra.mxu0 0
    %336 = vmatprep.subr.bf16.mxu0 0
    %337 = vmatpush2.bf16.msra.mxu0 0
    %338 = vmatprep.subr.bf16.mxu0 0
    %339 = vmatpush2.bf16.msra.mxu0 0
    %340 = vmatprep.subr.bf16.mxu0 0
    %341 = vmatpush2.bf16.msra.mxu0 0
    %342 = vmatprep.subr.bf16.mxu0 0
    %343 = vmatpush2.bf16.msra.mxu0 0
    %344 = vmatprep.subr.bf16.mxu0 0
    %345 = vmatpush2.bf16.msra.mxu0 0
    %346 = vmatprep.subr.bf16.mxu0 0
    %347 = vmatpush2.bf16.msra.mxu0 0
    %348 = vmatprep.subr.bf16.mxu0 0
    %349 = vmatpush2.bf16.msra.mxu0 0
    %350 = vmatprep.mubr.bf16.mxu0 0
    %351 = vmatmul.mubr.bf16.gmra.mxu0 %v316
    %v352 = vpop.f32.mrf.mxu0
    %v353 = vadd.f32 %v302, %v352
    %v354 = vpop.f32.mrf.mxu0
    %v355 = vpop.f32.mrf.mxu0
    %v356 = vadd.f32 %v302, %v355
    %v357 = vpop.f32.mrf.mxu0
    %358 = vdwg.mxu0
    %v359 = vpack.c.bf16 %v353, %v353
    %v360 = vpack.c.bf16 %v356, %v356
    %362 = vrot.lane.b32.xlu0 %v359, 96
    %v363 = vpop.permute.xlu0 %362
    %vm364 = vcmask 130048
    %v366 = vsel %vm364, %v359, 0
    %v369 = vsel %vm364, %v363, 0
    %371 = vmatprep.subr.bf16.mxu0 0
    %372 = vmatpush1.bf16.xpose.msra.mxu0 0
    %373 = vmatprep.subr.bf16.mxu0 0
    %374 = vmatpush1.bf16.xpose.msra.mxu0 0
    %375 = vmatprep.subr.bf16.mxu0 0
    %376 = vmatpush1.bf16.xpose.msra.mxu0 0
    %377 = vmatprep.subr.bf16.mxu0 0
    %378 = vmatpush1.bf16.xpose.msra.mxu0 0
    %379 = vmatprep.subr.bf16.mxu0 0
    %380 = vmatpush1.bf16.xpose.msra.mxu0 0
    %381 = vmatprep.subr.bf16.mxu0 0
    %382 = vmatpush1.bf16.xpose.msra.mxu0 0
    %383 = vmatprep.subr.bf16.mxu0 0
    %384 = vmatpush1.bf16.xpose.msra.mxu0 0
    %385 = vmatprep.subr.bf16.mxu0 0
    %386 = vmatpush1.bf16.xpose.msra.mxu0 %v369
    %387 = vmatprep.subr.bf16.mxu0 0
    %388 = vmatpush2.bf16.xpose.msra.mxu0 0
    %389 = vmatprep.subr.bf16.mxu0 0
    %390 = vmatpush2.bf16.xpose.msra.mxu0 0
    %391 = vmatprep.subr.bf16.mxu0 0
    %392 = vmatpush2.bf16.xpose.msra.mxu0 0
    %393 = vmatprep.subr.bf16.mxu0 0
    %394 = vmatpush2.bf16.xpose.msra.mxu0 0
    %395 = vmatprep.subr.bf16.mxu0 0
    %396 = vmatpush2.bf16.xpose.msra.mxu0 0
    %397 = vmatprep.subr.bf16.mxu0 0
    %398 = vmatpush2.bf16.xpose.msra.mxu0 0
    %399 = vmatprep.subr.bf16.mxu0 0
    %400 = vmatpush2.bf16.xpose.msra.mxu0 0
    %401 = vmatprep.subr.bf16.mxu0 0
    %402 = vmatpush2.bf16.xpose.msra.mxu0 0
    %403 = vmatprep.mubr.bf16.mxu0 0
    %404 = vmatmul.mubr.bf16.gmra.mxu0 %v366
    %v405 = vpop.f32.mrf.mxu0
    %v406 = vadd.f32 0.0, %v405
    %v407 = vpop.f32.mrf.mxu0
    %v408 = vpop.f32.mrf.mxu0
    %v409 = vpop.f32.mrf.mxu0
    %410 = vdwg.mxu0
    %412 = vrot.lane.b32.xlu0 %v360, 96
    %v413 = vpop.permute.xlu0 %412
    %v415 = vsel %vm364, %v360, 0
    %v418 = vsel %vm364, %v413, 0
    %420 = vmatprep.subr.bf16.mxu0 0
    %421 = vmatpush1.bf16.xpose.msra.mxu0 0
    %422 = vmatprep.subr.bf16.mxu0 0
    %423 = vmatpush1.bf16.xpose.msra.mxu0 0
    %424 = vmatprep.subr.bf16.mxu0 0
    %425 = vmatpush1.bf16.xpose.msra.mxu0 0
    %426 = vmatprep.subr.bf16.mxu0 0
    %427 = vmatpush1.bf16.xpose.msra.mxu0 0
    %428 = vmatprep.subr.bf16.mxu0 0
    %429 = vmatpush1.bf16.xpose.msra.mxu0 0
    %430 = vmatprep.subr.bf16.mxu0 0
    %431 = vmatpush1.bf16.xpose.msra.mxu0 0
    %432 = vmatprep.subr.bf16.mxu0 0
    %433 = vmatpush1.bf16.xpose.msra.mxu0 0
    %434 = vmatprep.subr.bf16.mxu0 0
    %435 = vmatpush1.bf16.xpose.msra.mxu0 %v418
    %436 = vmatprep.subr.bf16.mxu0 0
    %437 = vmatpush2.bf16.xpose.msra.mxu0 0
    %438 = vmatprep.subr.bf16.mxu0 0
    %439 = vmatpush2.bf16.xpose.msra.mxu0 0
    %440 = vmatprep.subr.bf16.mxu0 0
    %441 = vmatpush2.bf16.xpose.msra.mxu0 0
    %442 = vmatprep.subr.bf16.mxu0 0
    %443 = vmatpush2.bf16.xpose.msra.mxu0 0
    %444 = vmatprep.subr.bf16.mxu0 0
    %445 = vmatpush2.bf16.xpose.msra.mxu0 0
    %446 = vmatprep.subr.bf16.mxu0 0
    %447 = vmatpush2.bf16.xpose.msra.mxu0 0
    %448 = vmatprep.subr.bf16.mxu0 0
    %449 = vmatpush2.bf16.xpose.msra.mxu0 0
    %450 = vmatprep.subr.bf16.mxu0 0
    %451 = vmatpush2.bf16.xpose.msra.mxu0 0
    %452 = vmatprep.mubr.bf16.mxu0 0
    %453 = vmatmul.mubr.bf16.gmra.mxu0 %v415
    %v454 = vpop.f32.mrf.mxu0
    %v455 = vadd.f32 0.0, %v454
    %v456 = vpop.f32.mrf.mxu0
    %v457 = vpop.f32.mrf.mxu0
    %v458 = vpop.f32.mrf.mxu0
    %459 = vdwg.mxu0
    %v460 = vmul.f32 %v406, 0.25
    %v461 = vmul.f32 %v455, 0.25
    %v464 = vlaneseq
    %v465 = vshrl.u32 %v464, 7
    %v466 = vsub.s32 0, %v465
    %v467 = vrot.slane %v272, %v466
    %v468 = vlaneseq
    %v469 = vshrl.u32 %v468, 7
    %v470 = vsub.s32 0, %v469
    %v471 = vrot.slane %v273, %v470
    %v474 = vadd.f32 %v460, %v467
    %v475 = vadd.f32 %v461, %v471
    %vm476 = vcmask 64512
    %v477 = vsel %vm476, %v474, -inf
    %478 = vmax.xlane.f32.xlu0 %v477
    %v479 = vpop.xlane.xlu0 %478
    %v480 = vsel %vm476, %v475, -inf
    %481 = vmax.xlane.f32.xlu0 %v480
    %v482 = vpop.xlane.xlu0 %481
    %v483 = vsub.f32 %v474, %v479
    %v484 = vsub.f32 %v475, %v482
    %v485 = vmul.f32 %v483, 1.442695
    %v486 = vpow.pop %v485
    %v487 = vmul.f32 %v484, 1.442695
    %v488 = vpow.pop %v487
    %v489 = vsel %vm476, %v486, 0.0
    %490 = vadd.xlane.f32.xlu0 %v489
    %v491 = vpop.xlane.xlu0 %490
    %v492 = vsel %vm476, %v488, 0.0
    %493 = vadd.xlane.f32.xlu0 %v492
    %v494 = vpop.xlane.xlu0 %493
    %v495 = vrcp.pop %v491
    %v496 = vrcp.pop %v494
    %v497 = vmul.f32 %v486, %v495
    %v498 = vmul.f32 %v488, %v496
    %v499 = vpack.c.bf16 %v497, %v497
    %v500 = vpack.c.bf16 %v498, %v498
    %501 = vrot.lane.b32.xlu0 %v359, 64
    %v502 = vpop.permute.xlu0 %501
    %v504 = vsel %vm476, %v499, 0
    %vm506 = vcmask 1043456
    %v508 = vsel %vm506, %v502, 0
    %510 = vmatprep.subr.bf16.mxu0 0
    %511 = vmatpush1.bf16.msra.mxu0 0
    %512 = vmatprep.subr.bf16.mxu0 0
    %513 = vmatpush1.bf16.msra.mxu0 0
    %514 = vmatprep.subr.bf16.mxu0 0
    %515 = vmatpush1.bf16.msra.mxu0 0
    %516 = vmatprep.subr.bf16.mxu0 0
    %517 = vmatpush1.bf16.msra.mxu0 0
    %518 = vmatprep.subr.bf16.mxu0 0
    %519 = vmatpush1.bf16.msra.mxu0 0
    %520 = vmatprep.subr.bf16.mxu0 0
    %521 = vmatpush1.bf16.msra.mxu0 0
    %522 = vmatprep.subr.bf16.mxu0 0
    %523 = vmatpush1.bf16.msra.mxu0 0
    %524 = vmatprep.subr.bf16.mxu0 0
    %525 = vmatpush1.bf16.msra.mxu0 %v508
    %526 = vmatprep.subr.bf16.mxu0 0
    %527 = vmatpush2.bf16.msra.mxu0 0
    %528 = vmatprep.subr.bf16.mxu0 0
    %529 = vmatpush2.bf16.msra.mxu0 0
    %530 = vmatprep.subr.bf16.mxu0 0
    %531 = vmatpush2.bf16.msra.mxu0 0
    %532 = vmatprep.subr.bf16.mxu0 0
    %533 = vmatpush2.bf16.msra.mxu0 0
    %534 = vmatprep.subr.bf16.mxu0 0
    %535 = vmatpush2.bf16.msra.mxu0 0
    %536 = vmatprep.subr.bf16.mxu0 0
    %537 = vmatpush2.bf16.msra.mxu0 0
    %538 = vmatprep.subr.bf16.mxu0 0
    %539 = vmatpush2.bf16.msra.mxu0 0
    %540 = vmatprep.subr.bf16.mxu0 0
    %541 = vmatpush2.bf16.msra.mxu0 0
    %542 = vmatprep.mubr.bf16.mxu0 0
    %543 = vmatmul.mubr.bf16.gmra.mxu0 %v504
    %v544 = vpop.f32.mrf.mxu0
    %v545 = vadd.f32 0.0, %v544
    %v546 = vpop.f32.mrf.mxu0
    %v547 = vpop.f32.mrf.mxu0
    %v548 = vpop.f32.mrf.mxu0
    %549 = vdwg.mxu0
    %550 = vrot.lane.b32.xlu0 %v360, 64
    %v551 = vpop.permute.xlu0 %550
    %v553 = vsel %vm476, %v500, 0
    %v556 = vsel %vm506, %v551, 0
    %558 = vmatprep.subr.bf16.mxu0 0
    %559 = vmatpush1.bf16.msra.mxu0 0
    %560 = vmatprep.subr.bf16.mxu0 0
    %561 = vmatpush1.bf16.msra.mxu0 0
    %562 = vmatprep.subr.bf16.mxu0 0
    %563 = vmatpush1.bf16.msra.mxu0 0
    %564 = vmatprep.subr.bf16.mxu0 0
    %565 = vmatpush1.bf16.msra.mxu0 0
    %566 = vmatprep.subr.bf16.mxu0 0
    %567 = vmatpush1.bf16.msra.mxu0 0
    %568 = vmatprep.subr.bf16.mxu0 0
    %569 = vmatpush1.bf16.msra.mxu0 0
    %570 = vmatprep.subr.bf16.mxu0 0
    %571 = vmatpush1.bf16.msra.mxu0 0
    %572 = vmatprep.subr.bf16.mxu0 0
    %573 = vmatpush1.bf16.msra.mxu0 %v556
    %574 = vmatprep.subr.bf16.mxu0 0
    %575 = vmatpush2.bf16.msra.mxu0 0
    %576 = vmatprep.subr.bf16.mxu0 0
    %577 = vmatpush2.bf16.msra.mxu0 0
    %578 = vmatprep.subr.bf16.mxu0 0
    %579 = vmatpush2.bf16.msra.mxu0 0
    %580 = vmatprep.subr.bf16.mxu0 0
    %581 = vmatpush2.bf16.msra.mxu0 0
    %582 = vmatprep.subr.bf16.mxu0 0
    %583 = vmatpush2.bf16.msra.mxu0 0
    %584 = vmatprep.subr.bf16.mxu0 0
    %585 = vmatpush2.bf16.msra.mxu0 0
    %586 = vmatprep.subr.bf16.mxu0 0
    %587 = vmatpush2.bf16.msra.mxu0 0
    %588 = vmatprep.subr.bf16.mxu0 0
    %589 = vmatpush2.bf16.msra.mxu0 0
    %590 = vmatprep.mubr.bf16.mxu0 0
    %591 = vmatmul.mubr.bf16.gmra.mxu0 %v553
    %v592 = vpop.f32.mrf.mxu0
    %v593 = vadd.f32 0.0, %v592
    %v594 = vpop.f32.mrf.mxu0
    %v595 = vpop.f32.mrf.mxu0
    %v596 = vpop.f32.mrf.mxu0
    %597 = vdwg.mxu0
    %598 = vrot.lane.b32.xlu0 %v359, 112
    %v599 = vpop.permute.xlu0 %598
    %600 = vrot.lane.b32.xlu0 %v359, 80
    %v601 = vpop.permute.xlu0 %600
    %v603 = vsel %vm364, %v599, 0
    %v606 = vsel %vm364, %v601, 0
    %608 = vmatprep.subr.bf16.mxu0 0
    %609 = vmatpush1.bf16.xpose.msra.mxu0 0
    %610 = vmatprep.subr.bf16.mxu0 0
    %611 = vmatpush1.bf16.xpose.msra.mxu0 0
    %612 = vmatprep.subr.bf16.mxu0 0
    %613 = vmatpush1.bf16.xpose.msra.mxu0 0
    %614 = vmatprep.subr.bf16.mxu0 0
    %615 = vmatpush1.bf16.xpose.msra.mxu0 0
    %616 = vmatprep.subr.bf16.mxu0 0
    %617 = vmatpush1.bf16.xpose.msra.mxu0 0
    %618 = vmatprep.subr.bf16.mxu0 0
    %619 = vmatpush1.bf16.xpose.msra.mxu0 0
    %620 = vmatprep.subr.bf16.mxu0 0
    %621 = vmatpush1.bf16.xpose.msra.mxu0 0
    %622 = vmatprep.subr.bf16.mxu0 0
    %623 = vmatpush1.bf16.xpose.msra.mxu0 %v606
    %624 = vmatprep.subr.bf16.mxu0 0
    %625 = vmatpush2.bf16.xpose.msra.mxu0 0
    %626 = vmatprep.subr.bf16.mxu0 0
    %627 = vmatpush2.bf16.xpose.msra.mxu0 0
    %628 = vmatprep.subr.bf16.mxu0 0
    %629 = vmatpush2.bf16.xpose.msra.mxu0 0
    %630 = vmatprep.subr.bf16.mxu0 0
    %631 = vmatpush2.bf16.xpose.msra.mxu0 0
    %632 = vmatprep.subr.bf16.mxu0 0
    %633 = vmatpush2.bf16.xpose.msra.mxu0 0
    %634 = vmatprep.subr.bf16.mxu0 0
    %635 = vmatpush2.bf16.xpose.msra.mxu0 0
    %636 = vmatprep.subr.bf16.mxu0 0
    %637 = vmatpush2.bf16.xpose.msra.mxu0 0
    %638 = vmatprep.subr.bf16.mxu0 0
    %639 = vmatpush2.bf16.xpose.msra.mxu0 0
    %640 = vmatprep.mubr.bf16.mxu0 0
    %641 = vmatmul.mubr.bf16.gmra.mxu0 %v603
    %v642 = vpop.f32.mrf.mxu0
    %v643 = vadd.f32 0.0, %v642
    %v644 = vpop.f32.mrf.mxu0
    %v645 = vpop.f32.mrf.mxu0
    %v646 = vpop.f32.mrf.mxu0
    %647 = vdwg.mxu0
    %648 = vrot.lane.b32.xlu0 %v360, 112
    %v649 = vpop.permute.xlu0 %648
    %650 = vrot.lane.b32.xlu0 %v360, 80
    %v651 = vpop.permute.xlu0 %650
    %v653 = vsel %vm364, %v649, 0
    %v656 = vsel %vm364, %v651, 0
    %658 = vmatprep.subr.bf16.mxu0 0
    %659 = vmatpush1.bf16.xpose.msra.mxu0 0
    %660 = vmatprep.subr.bf16.mxu0 0
    %661 = vmatpush1.bf16.xpose.msra.mxu0 0
    %662 = vmatprep.subr.bf16.mxu0 0
    %663 = vmatpush1.bf16.xpose.msra.mxu0 0
    %664 = vmatprep.subr.bf16.mxu0 0
    %665 = vmatpush1.bf16.xpose.msra.mxu0 0
    %666 = vmatprep.subr.bf16.mxu0 0
    %667 = vmatpush1.bf16.xpose.msra.mxu0 0
    %668 = vmatprep.subr.bf16.mxu0 0
    %669 = vmatpush1.bf16.xpose.msra.mxu0 0
    %670 = vmatprep.subr.bf16.mxu0 0
    %671 = vmatpush1.bf16.xpose.msra.mxu0 0
    %672 = vmatprep.subr.bf16.mxu0 0
    %673 = vmatpush1.bf16.xpose.msra.mxu0 %v656
    %674 = vmatprep.subr.bf16.mxu0 0
    %675 = vmatpush2.bf16.xpose.msra.mxu0 0
    %676 = vmatprep.subr.bf16.mxu0 0
    %677 = vmatpush2.bf16.xpose.msra.mxu0 0
    %678 = vmatprep.subr.bf16.mxu0 0
    %679 = vmatpush2.bf16.xpose.msra.mxu0 0
    %680 = vmatprep.subr.bf16.mxu0 0
    %681 = vmatpush2.bf16.xpose.msra.mxu0 0
    %682 = vmatprep.subr.bf16.mxu0 0
    %683 = vmatpush2.bf16.xpose.msra.mxu0 0
    %684 = vmatprep.subr.bf16.mxu0 0
    %685 = vmatpush2.bf16.xpose.msra.mxu0 0
    %686 = vmatprep.subr.bf16.mxu0 0
    %687 = vmatpush2.bf16.xpose.msra.mxu0 0
    %688 = vmatprep.subr.bf16.mxu0 0
    %689 = vmatpush2.bf16.xpose.msra.mxu0 0
    %690 = vmatprep.mubr.bf16.mxu0 0
    %691 = vmatmul.mubr.bf16.gmra.mxu0 %v653
    %v692 = vpop.f32.mrf.mxu0
    %v693 = vadd.f32 0.0, %v692
    %v694 = vpop.f32.mrf.mxu0
    %v695 = vpop.f32.mrf.mxu0
    %v696 = vpop.f32.mrf.mxu0
    %697 = vdwg.mxu0
    %v698 = vmul.f32 %v643, 0.25
    %v699 = vmul.f32 %v693, 0.25
    %v700 = vadd.f32 %v698, %v467
    %v701 = vadd.f32 %v699, %v471
    %v702 = vsel %vm476, %v700, -inf
    %703 = vmax.xlane.f32.xlu0 %v702
    %v704 = vpop.xlane.xlu0 %703
    %v705 = vsel %vm476, %v701, -inf
    %706 = vmax.xlane.f32.xlu0 %v705
    %v707 = vpop.xlane.xlu0 %706
    %v708 = vsub.f32 %v700, %v704
    %v709 = vsub.f32 %v701, %v707
    %v710 = vmul.f32 %v708, 1.442695
    %v711 = vpow.pop %v710
    %v712 = vmul.f32 %v709, 1.442695
    %v713 = vpow.pop %v712
    %v714 = vsel %vm476, %v711, 0.0
    %715 = vadd.xlane.f32.xlu0 %v714
    %v716 = vpop.xlane.xlu0 %715
    %v717 = vsel %vm476, %v713, 0.0
    %718 = vadd.xlane.f32.xlu0 %v717
    %v719 = vpop.xlane.xlu0 %718
    %v720 = vrcp.pop %v716
    %v721 = vrcp.pop %v719
    %v722 = vmul.f32 %v711, %v720
    %v723 = vmul.f32 %v713, %v721
    %v724 = vpack.c.bf16 %v722, %v722
    %v725 = vpack.c.bf16 %v723, %v723
    %726 = vrot.lane.b32.xlu0 %v359, 48
    %v727 = vpop.permute.xlu0 %726
    %v729 = vsel %vm476, %v724, 0
    %v732 = vsel %vm506, %v727, 0
    %734 = vmatprep.subr.bf16.mxu0 0
    %735 = vmatpush1.bf16.msra.mxu0 0
    %736 = vmatprep.subr.bf16.mxu0 0
    %737 = vmatpush1.bf16.msra.mxu0 0
    %738 = vmatprep.subr.bf16.mxu0 0
    %739 = vmatpush1.bf16.msra.mxu0 0
    %740 = vmatprep.subr.bf16.mxu0 0
    %741 = vmatpush1.bf16.msra.mxu0 0
    %742 = vmatprep.subr.bf16.mxu0 0
    %743 = vmatpush1.bf16.msra.mxu0 0
    %744 = vmatprep.subr.bf16.mxu0 0
    %745 = vmatpush1.bf16.msra.mxu0 0
    %746 = vmatprep.subr.bf16.mxu0 0
    %747 = vmatpush1.bf16.msra.mxu0 0
    %748 = vmatprep.subr.bf16.mxu0 0
    %749 = vmatpush1.bf16.msra.mxu0 %v732
    %750 = vmatprep.subr.bf16.mxu0 0
    %751 = vmatpush2.bf16.msra.mxu0 0
    %752 = vmatprep.subr.bf16.mxu0 0
    %753 = vmatpush2.bf16.msra.mxu0 0
    %754 = vmatprep.subr.bf16.mxu0 0
    %755 = vmatpush2.bf16.msra.mxu0 0
    %756 = vmatprep.subr.bf16.mxu0 0
    %757 = vmatpush2.bf16.msra.mxu0 0
    %758 = vmatprep.subr.bf16.mxu0 0
    %759 = vmatpush2.bf16.msra.mxu0 0
    %760 = vmatprep.subr.bf16.mxu0 0
    %761 = vmatpush2.bf16.msra.mxu0 0
    %762 = vmatprep.subr.bf16.mxu0 0
    %763 = vmatpush2.bf16.msra.mxu0 0
    %764 = vmatprep.subr.bf16.mxu0 0
    %765 = vmatpush2.bf16.msra.mxu0 0
    %766 = vmatprep.mubr.bf16.mxu0 0
    %767 = vmatmul.mubr.bf16.gmra.mxu0 %v729
    %v768 = vpop.f32.mrf.mxu0
    %v769 = vadd.f32 0.0, %v768
    %v770 = vpop.f32.mrf.mxu0
    %v771 = vpop.f32.mrf.mxu0
    %v772 = vpop.f32.mrf.mxu0
    %773 = vdwg.mxu0
    %774 = vrot.lane.b32.xlu0 %v360, 48
    %v775 = vpop.permute.xlu0 %774
    %v777 = vsel %vm476, %v725, 0
    %v780 = vsel %vm506, %v775, 0
    %782 = vmatprep.subr.bf16.mxu0 0
    %783 = vmatpush1.bf16.msra.mxu0 0
    %784 = vmatprep.subr.bf16.mxu0 0
    %785 = vmatpush1.bf16.msra.mxu0 0
    %786 = vmatprep.subr.bf16.mxu0 0
    %787 = vmatpush1.bf16.msra.mxu0 0
    %788 = vmatprep.subr.bf16.mxu0 0
    %789 = vmatpush1.bf16.msra.mxu0 0
    %790 = vmatprep.subr.bf16.mxu0 0
    %791 = vmatpush1.bf16.msra.mxu0 0
    %792 = vmatprep.subr.bf16.mxu0 0
    %793 = vmatpush1.bf16.msra.mxu0 0
    %794 = vmatprep.subr.bf16.mxu0 0
    %795 = vmatpush1.bf16.msra.mxu0 0
    %796 = vmatprep.subr.bf16.mxu0 0
    %797 = vmatpush1.bf16.msra.mxu0 %v780
    %798 = vmatprep.subr.bf16.mxu0 0
    %799 = vmatpush2.bf16.msra.mxu0 0
    %800 = vmatprep.subr.bf16.mxu0 0
    %801 = vmatpush2.bf16.msra.mxu0 0
    %802 = vmatprep.subr.bf16.mxu0 0
    %803 = vmatpush2.bf16.msra.mxu0 0
    %804 = vmatprep.subr.bf16.mxu0 0
    %805 = vmatpush2.bf16.msra.mxu0 0
    %806 = vmatprep.subr.bf16.mxu0 0
    %807 = vmatpush2.bf16.msra.mxu0 0
    %808 = vmatprep.subr.bf16.mxu0 0
    %809 = vmatpush2.bf16.msra.mxu0 0
    %810 = vmatprep.subr.bf16.mxu0 0
    %811 = vmatpush2.bf16.msra.mxu0 0
    %812 = vmatprep.subr.bf16.mxu0 0
    %813 = vmatpush2.bf16.msra.mxu0 0
    %814 = vmatprep.mubr.bf16.mxu0 0
    %815 = vmatmul.mubr.bf16.gmra.mxu0 %v777
    %v816 = vpop.f32.mrf.mxu0
    %v817 = vadd.f32 0.0, %v816
    %v818 = vpop.f32.mrf.mxu0
    %v819 = vpop.f32.mrf.mxu0
    %v820 = vpop.f32.mrf.mxu0
    %821 = vdwg.mxu0
    %824 = vrot.lane.b32.xlu0 %v769, 16
    %v825 = vpop.permute.xlu0 %824
    %826 = vrot.lane.b32.xlu0 %v817, 16
    %v827 = vpop.permute.xlu0 %826
    %v830 = vsel %vm364, %v545, %v825
    %v831 = vsel %vm364, %v593, %v827
    %v832 = vpack.c.bf16 %v831, %v830
    %v833 = vlaneseq
    %v834 = vshrl.u32 %v833, 7
    %v835 = vsub.s32 0, %v834
    %v836 = vrot.slane %v291, %v835
    %837 = vrot.lane.b32.xlu0 %v311, 32
    %v838 = vpop.permute.xlu0 %837
    %839 = vrot.lane.b32.xlu0 %v312, 32
    %v840 = vpop.permute.xlu0 %839
    %v844 = vsel %vm228, %v832, 0
    %846 = vmatprep.subr.bf16.mxu0 0
    %847 = vmatpush1.bf16.msra.mxu0 0
    %848 = vmatprep.subr.bf16.mxu0 0
    %849 = vmatpush1.bf16.msra.mxu0 0
    %850 = vmatprep.subr.bf16.mxu0 0
    %851 = vmatpush1.bf16.msra.mxu0 0
    %852 = vmatprep.subr.bf16.mxu0 0
    %853 = vmatpush1.bf16.msra.mxu0 0
    %854 = vmatprep.subr.bf16.mxu0 0
    %855 = vmatpush1.bf16.msra.mxu0 0
    %856 = vmatprep.subr.bf16.mxu0 0
    %857 = vmatpush1.bf16.msra.mxu0 0
    %858 = vmatprep.subr.bf16.mxu0 0
    %859 = vmatpush1.bf16.msra.mxu0 %v840
    %860 = vmatprep.subr.bf16.mxu0 0
    %861 = vmatpush1.bf16.msra.mxu0 %v838
    %862 = vmatprep.subr.bf16.mxu0 0
    %863 = vmatpush2.bf16.msra.mxu0 0
    %864 = vmatprep.subr.bf16.mxu0 0
    %865 = vmatpush2.bf16.msra.mxu0 0
    %866 = vmatprep.subr.bf16.mxu0 0
    %867 = vmatpush2.bf16.msra.mxu0 0
    %868 = vmatprep.subr.bf16.mxu0 0
    %869 = vmatpush2.bf16.msra.mxu0 0
    %870 = vmatprep.subr.bf16.mxu0 0
    %871 = vmatpush2.bf16.msra.mxu0 0
    %872 = vmatprep.subr.bf16.mxu0 0
    %873 = vmatpush2.bf16.msra.mxu0 0
    %874 = vmatprep.subr.bf16.mxu0 0
    %875 = vmatpush2.bf16.msra.mxu0 0
    %876 = vmatprep.subr.bf16.mxu0 0
    %877 = vmatpush2.bf16.msra.mxu0 0
    %878 = vmatprep.mubr.bf16.mxu0 0
    %879 = vmatmul.mubr.bf16.gmra.mxu0 %v844
    %v880 = vpop.f32.mrf.mxu0
    %v881 = vadd.f32 %v836, %v880
    %v882 = vpop.f32.mrf.mxu0
    %v883 = vpop.f32.mrf.mxu0
    %v884 = vadd.f32 %v836, %v883
    %v885 = vpop.f32.mrf.mxu0
    %886 = vdwg.mxu0
    %v887 = vadd.f32 %v266, %v881
    %v888 = vadd.f32 %v267, %v884
    %v889 = vsel %vm228, %v887, 0.0
    %890 = vadd.xlane.f32.xlu0 %v889
    %v891 = vpop.xlane.xlu0 %890
    %v892 = vsel %vm228, %v888, 0.0
    %893 = vadd.xlane.f32.xlu0 %v892
    %v894 = vpop.xlane.xlu0 %893
    %v895 = vmul.f32 %v891, %v235
    %v896 = vmul.f32 %v894, %v235
    %v897 = vsub.f32 %v887, %v895
    %v898 = vsub.f32 %v888, %v896
    %v899 = vmul.f32 %v897, %v897
    %v900 = vmul.f32 %v898, %v898
    %v901 = vsel %vm228, %v899, 0.0
    %902 = vadd.xlane.f32.xlu0 %v901
    %v903 = vpop.xlane.xlu0 %902
    %v904 = vsel %vm228, %v900, 0.0
    %905 = vadd.xlane.f32.xlu0 %v904
    %v906 = vpop.xlane.xlu0 %905
    %v907 = vmul.f32 %v903, %v235
    %v908 = vmul.f32 %v906, %v235
    %v909 = vadd.f32 %v907, 1e-05
    %v910 = vadd.f32 %v908, 1e-05
    %v911 = vrsqrt.pop %v909
    %v912 = vrsqrt.pop %v910
    %v913 = vmul.f32 %v897, %v911
    %v914 = vmul.f32 %v898, %v912
    %v915 = vlaneseq
    %v916 = vshrl.u32 %v915, 7
    %v917 = vsub.s32 0, %v916
    %v918 = vrot.slane %v292, %v917
    %v919 = vmul.f32 %v913, %v918
    %v920 = vmul.f32 %v914, %v918
    %v921 = vlaneseq
    %v922 = vshrl.u32 %v921, 7
    %v923 = vsub.s32 0, %v922
    %v924 = vrot.slane %v293, %v923
    %v925 = vadd.f32 %v919, %v924
    %v926 = vadd.f32 %v920, %v924
    %v927 = vpack.c.bf16 %v926, %v925
    %v928 = vlaneseq
    %v929 = vshrl.u32 %v928, 7
    %v930 = vsub.s32 0, %v929
    %v931 = vrot.slane %v294, %v930
    %v936 = vunpack.c.l.b16 %v278
    %v937 = vunpack.c.l.b16 %v279
    %v938 = vunpack.c.l.b16 %v280
    %v939 = vunpack.c.l.b16 %v281
    %v940 = vpack.c.b16 %v937, %v936
    %v941 = vpack.c.b16 %v939, %v938
    %v945 = vsel %vm228, %v927, 0
    %947 = vmatprep.subr.bf16.mxu0 0
    %948 = vmatpush1.bf16.msra.mxu0 0
    %949 = vmatprep.subr.bf16.mxu0 0
    %950 = vmatpush1.bf16.msra.mxu0 0
    %951 = vmatprep.subr.bf16.mxu0 0
    %952 = vmatpush1.bf16.msra.mxu0 0
    %953 = vmatprep.subr.bf16.mxu0 0
    %954 = vmatpush1.bf16.msra.mxu0 0
    %955 = vmatprep.subr.bf16.mxu0 0
    %956 = vmatpush1.bf16.msra.mxu0 0
    %957 = vmatprep.subr.bf16.mxu0 0
    %958 = vmatpush1.bf16.msra.mxu0 0
    %959 = vmatprep.subr.bf16.mxu0 0
    %960 = vmatpush1.bf16.msra.mxu0 %v941
    %961 = vmatprep.subr.bf16.mxu0 0
    %962 = vmatpush1.bf16.msra.mxu0 %v940
    %963 = vmatprep.subr.bf16.mxu0 0
    %964 = vmatpush2.bf16.msra.mxu0 0
    %965 = vmatprep.subr.bf16.mxu0 0
    %966 = vmatpush2.bf16.msra.mxu0 0
    %967 = vmatprep.subr.bf16.mxu0 0
    %968 = vmatpush2.bf16.msra.mxu0 0
    %969 = vmatprep.subr.bf16.mxu0 0
    %970 = vmatpush2.bf16.msra.mxu0 0
    %971 = vmatprep.subr.bf16.mxu0 0
    %972 = vmatpush2.bf16.msra.mxu0 0
    %973 = vmatprep.subr.bf16.mxu0 0
    %974 = vmatpush2.bf16.msra.mxu0 0
    %975 = vmatprep.subr.bf16.mxu0 0
    %976 = vmatpush2.bf16.msra.mxu0 0
    %977 = vmatprep.subr.bf16.mxu0 0
    %978 = vmatpush2.bf16.msra.mxu0 0
    %979 = vmatprep.mubr.bf16.mxu0 0
    %980 = vmatmul.mubr.bf16.gmra.mxu0 %v945
    %v981 = vpop.f32.mrf.mxu0
    %v982 = vadd.f32 %v931, %v981
    %v983 = vpop.f32.mrf.mxu0
    %v984 = vpop.f32.mrf.mxu0
    %v985 = vadd.f32 %v931, %v984
    %v986 = vpop.f32.mrf.mxu0
    %987 = vdwg.mxu0
    %v988 = vmul.f32 %v982, 0.5
    %v989 = vmul.f32 %v985, 0.5
    %v990 = vmul.f32 %v982, 0.044715
    %v991 = vmul.f32 %v985, 0.044715
    %v992 = vmul.f32 %v990, %v982
    %v993 = vmul.f32 %v991, %v985
    %v994 = vmul.f32 %v992, %v982
    %v995 = vmul.f32 %v993, %v985
    %v996 = vadd.f32 %v982, %v994
    %v997 = vadd.f32 %v985, %v995
    %v998 = vmul.f32 %v996, 0.7978846
    %v999 = vmul.f32 %v997, 0.7978846
    %v1000 = vtanh.pop %v998
    %v1001 = vtanh.pop %v999
    %v1002 = vadd.f32 %v1000, 1.0
    %v1003 = vadd.f32 %v1001, 1.0
    %v1004 = vmul.f32 %v988, %v1002
    %v1005 = vmul.f32 %v989, %v1003
    %v1006 = vpack.c.bf16 %v1005, %v1004
    %v1007 = vlaneseq
    %v1008 = vshrl.u32 %v1007, 7
    %v1009 = vsub.s32 0, %v1008
    %v1010 = vrot.slane %v295, %v1009
    %v1019 = vunpack.c.l.b16 %v282
    %v1020 = vunpack.c.l.b16 %v283
    %v1021 = vunpack.c.l.b16 %v284
    %v1022 = vunpack.c.l.b16 %v285
    %v1023 = vunpack.c.l.b16 %v286
    %v1024 = vunpack.c.l.b16 %v287
    %v1025 = vunpack.c.l.b16 %v288
    %v1026 = vunpack.c.l.b16 %v289
    %v1027 = vpack.c.b16 %v1020, %v1019
    %v1028 = vpack.c.b16 %v1022, %v1021
    %v1029 = vpack.c.b16 %v1024, %v1023
    %v1030 = vpack.c.b16 %v1026, %v1025
    %vm1035 = vcmask 523264
    %v1037 = vsel %vm1035, %v1006, 0
    %1039 = vmatprep.subr.bf16.mxu0 0
    %1040 = vmatpush1.bf16.msra.mxu0 0
    %1041 = vmatprep.subr.bf16.mxu0 0
    %1042 = vmatpush1.bf16.msra.mxu0 0
    %1043 = vmatprep.subr.bf16.mxu0 0
    %1044 = vmatpush1.bf16.msra.mxu0 0
    %1045 = vmatprep.subr.bf16.mxu0 0
    %1046 = vmatpush1.bf16.msra.mxu0 0
    %1047 = vmatprep.subr.bf16.mxu0 0
    %1048 = vmatpush1.bf16.msra.mxu0 %v1030
    %1049 = vmatprep.subr.bf16.mxu0 0
    %1050 = vmatpush1.bf16.msra.mxu0 %v1029
    %1051 = vmatprep.subr.bf16.mxu0 0
    %1052 = vmatpush1.bf16.msra.mxu0 %v1028
    %1053 = vmatprep.subr.bf16.mxu0 0
    %1054 = vmatpush1.bf16.msra.mxu0 %v1027
    %1055 = vmatprep.subr.bf16.mxu0 0
    %1056 = vmatpush2.bf16.msra.mxu0 0
    %1057 = vmatprep.subr.bf16.mxu0 0
    %1058 = vmatpush2.bf16.msra.mxu0 0
    %1059 = vmatprep.subr.bf16.mxu0 0
    %1060 = vmatpush2.bf16.msra.mxu0 0
    %1061 = vmatprep.subr.bf16.mxu0 0
    %1062 = vmatpush2.bf16.msra.mxu0 0
    %1063 = vmatprep.subr.bf16.mxu0 0
    %1064 = vmatpush2.bf16.msra.mxu0 0
    %1065 = vmatprep.subr.bf16.mxu0 0
    %1066 = vmatpush2.bf16.msra.mxu0 0
    %1067 = vmatprep.subr.bf16.mxu0 0
    %1068 = vmatpush2.bf16.msra.mxu0 0
    %1069 = vmatprep.subr.bf16.mxu0 0
    %1070 = vmatpush2.bf16.msra.mxu0 0
    %1071 = vmatprep.mubr.bf16.mxu0 0
    %1072 = vmatmul.mubr.bf16.gmra.mxu0 %v1037
    %v1073 = vpop.f32.mrf.mxu0
    %v1074 = vadd.f32 %v1010, %v1073
    %v1075 = vpop.f32.mrf.mxu0
    %v1076 = vpop.f32.mrf.mxu0
    %v1077 = vadd.f32 %v1010, %v1076
    %v1078 = vpop.f32.mrf.mxu0
    %1079 = vdwg.mxu0
    %v1080 = vadd.f32 %v925, %v1074
    %v1081 = vadd.f32 %v926, %v1077
    %v1082 = vsel %vm228, %v1080, 0.0
    %1083 = vadd.xlane.f32.xlu0 %v1082
    %v1084 = vpop.xlane.xlu0 %1083
    %v1085 = vsel %vm228, %v1081, 0.0
    %1086 = vadd.xlane.f32.xlu0 %v1085
    %v1087 = vpop.xlane.xlu0 %1086
    %v1088 = vmul.f32 %v1084, %v235
    %v1089 = vmul.f32 %v1087, %v235
    %v1090 = vsub.f32 %v1080, %v1088
    %v1091 = vsub.f32 %v1081, %v1089
    %v1092 = vmul.f32 %v1090, %v1090
    %v1093 = vmul.f32 %v1091, %v1091
    %v1094 = vsel %vm228, %v1092, 0.0
    %1095 = vadd.xlane.f32.xlu0 %v1094
    %v1096 = vpop.xlane.xlu0 %1095
    %v1097 = vsel %vm228, %v1093, 0.0
    %1098 = vadd.xlane.f32.xlu0 %v1097
    %v1099 = vpop.xlane.xlu0 %1098
    %v1100 = vmul.f32 %v1096, %v235
    %v1101 = vmul.f32 %v1099, %v235
    %v1102 = vadd.f32 %v1100, 1e-05
    %v1103 = vadd.f32 %v1101, 1e-05
    %v1104 = vrsqrt.pop %v1102
    %v1105 = vrsqrt.pop %v1103
    %v1106 = vmul.f32 %v1090, %v1104
    %v1107 = vmul.f32 %v1091, %v1105
    %v1108 = vlaneseq
    %v1109 = vshrl.u32 %v1108, 7
    %v1110 = vsub.s32 0, %v1109
    %v1111 = vrot.slane %v296, %v1110
    %v1112 = vmul.f32 %v1106, %v1111
    %v1113 = vmul.f32 %v1107, %v1111
    %v1114 = vlaneseq
    %v1115 = vshrl.u32 %v1114, 7
    %v1116 = vsub.s32 0, %v1115
    %v1117 = vrot.slane %v297, %v1116
    %v1118 = vadd.f32 %v1112, %v1117
    %v1119 = vadd.f32 %v1113, %v1117
    %s1120 = scalar_lea.vmem %s3, 32
    %v1121 = vld [vmem:[%s1120] sm:$0xf]
    %v1122 = vld [vmem:[%s1120 + $0x8] sm:$0xf]
    %v1123 = vld [vmem:[%s1120 + $0x10] sm:$0xf]
    %v1124 = vld [vmem:[%s1120 + $0x18] sm:$0xf]
    %v1125 = vld [vmem:[%s1120 + $0x4] sm:$0xf]
    %v1126 = vld [vmem:[%s1120 + $0xc] sm:$0xf]
    %v1127 = vld [vmem:[%s1120 + $0x14] sm:$0xf]
    %v1128 = vld [vmem:[%s1120 + $0x1c] sm:$0xf]
    %s1129 = scalar_lea.vmem %s4, 32
    %v1130 = vld [vmem:[%s1129] sm:$0xf]
    %v1131 = vld [vmem:[%s1129 + $0x4] sm:$0xf]
    %v1132 = vld [vmem:[%s1129 + $0x8] sm:$0xf]
    %v1133 = vld [vmem:[%s1129 + $0xc] sm:$0xf]
    %v1134 = vld [vmem:[%s1129 + $0x10] sm:$0xf]
    %v1135 = vld [vmem:[%s1129 + $0x14] sm:$0xf]
    %v1136 = vld [vmem:[%s1129 + $0x18] sm:$0xf]
    %v1137 = vld [vmem:[%s1129 + $0x1c] sm:$0xf]
    %s1138 = scalar_lea.vmem %s5, 8
    %v1139 = vld [vmem:[%s1138] sm:$0x1]
    %v1140 = vld [vmem:[%s1138 + $0x1] sm:$0x1]
    %v1141 = vld [vmem:[%s1138 + $0x2] sm:$0x1]
    %v1142 = vld [vmem:[%s1138 + $0x3] sm:$0x1]
    %v1143 = vld [vmem:[%s1138 + $0x4] sm:$0x1]
    %v1144 = vld [vmem:[%s1138 + $0x5] sm:$0x1]
    %v1145 = vld [vmem:[%s1138 + $0x6] sm:$0x1]
    %v1146 = vld [vmem:[%s1138 + $0x7] sm:$0x1]
    %v1147 = vpack.c.bf16 %v1119, %v1118
    %v1148 = vlaneseq
    %v1149 = vshrl.u32 %v1148, 7
    %v1150 = vsub.s32 0, %v1149
    %v1151 = vrot.slane %v1139, %v1150
    %v1156 = vunpack.c.l.b16 %v1121
    %v1157 = vunpack.c.l.b16 %v1122
    %v1158 = vunpack.c.l.b16 %v1123
    %v1159 = vunpack.c.l.b16 %v1124
    %v1160 = vpack.c.b16 %v1157, %v1156
    %v1161 = vpack.c.b16 %v1159, %v1158
    %v1165 = vsel %vm228, %v1147, 0
    %1167 = vmatprep.subr.bf16.mxu0 0
    %1168 = vmatpush1.bf16.msra.mxu0 0
    %1169 = vmatprep.subr.bf16.mxu0 0
    %1170 = vmatpush1.bf16.msra.mxu0 0
    %1171 = vmatprep.subr.bf16.mxu0 0
    %1172 = vmatpush1.bf16.msra.mxu0 0
    %1173 = vmatprep.subr.bf16.mxu0 0
    %1174 = vmatpush1.bf16.msra.mxu0 0
    %1175 = vmatprep.subr.bf16.mxu0 0
    %1176 = vmatpush1.bf16.msra.mxu0 0
    %1177 = vmatprep.subr.bf16.mxu0 0
    %1178 = vmatpush1.bf16.msra.mxu0 0
    %1179 = vmatprep.subr.bf16.mxu0 0
    %1180 = vmatpush1.bf16.msra.mxu0 %v1161
    %1181 = vmatprep.subr.bf16.mxu0 0
    %1182 = vmatpush1.bf16.msra.mxu0 %v1160
    %1183 = vmatprep.subr.bf16.mxu0 0
    %1184 = vmatpush2.bf16.msra.mxu0 0
    %1185 = vmatprep.subr.bf16.mxu0 0
    %1186 = vmatpush2.bf16.msra.mxu0 0
    %1187 = vmatprep.subr.bf16.mxu0 0
    %1188 = vmatpush2.bf16.msra.mxu0 0
    %1189 = vmatprep.subr.bf16.mxu0 0
    %1190 = vmatpush2.bf16.msra.mxu0 0
    %1191 = vmatprep.subr.bf16.mxu0 0
    %1192 = vmatpush2.bf16.msra.mxu0 0
    %1193 = vmatprep.subr.bf16.mxu0 0
    %1194 = vmatpush2.bf16.msra.mxu0 0
    %1195 = vmatprep.subr.bf16.mxu0 0
    %1196 = vmatpush2.bf16.msra.mxu0 0
    %1197 = vmatprep.subr.bf16.mxu0 0
    %1198 = vmatpush2.bf16.msra.mxu0 0
    %1199 = vmatprep.mubr.bf16.mxu0 0
    %1200 = vmatmul.mubr.bf16.gmra.mxu0 %v1165
    %v1201 = vpop.f32.mrf.mxu0
    %v1202 = vadd.f32 %v1151, %v1201
    %v1203 = vpop.f32.mrf.mxu0
    %v1204 = vpop.f32.mrf.mxu0
    %v1205 = vadd.f32 %v1151, %v1204
    %v1206 = vpop.f32.mrf.mxu0
    %1207 = vdwg.mxu0
    %v1208 = vpack.c.bf16 %v1202, %v1202
    %v1209 = vpack.c.bf16 %v1205, %v1205
    %1211 = vrot.lane.b32.xlu0 %v1208, 96
    %v1212 = vpop.permute.xlu0 %1211
    %v1214 = vsel %vm364, %v1208, 0
    %v1217 = vsel %vm364, %v1212, 0
    %1219 = vmatprep.subr.bf16.mxu0 0
    %1220 = vmatpush1.bf16.xpose.msra.mxu0 0
    %1221 = vmatprep.subr.bf16.mxu0 0
    %1222 = vmatpush1.bf16.xpose.msra.mxu0 0
    %1223 = vmatprep.subr.bf16.mxu0 0
    %1224 = vmatpush1.bf16.xpose.msra.mxu0 0
    %1225 = vmatprep.subr.bf16.mxu0 0
    %1226 = vmatpush1.bf16.xpose.msra.mxu0 0
    %1227 = vmatprep.subr.bf16.mxu0 0
    %1228 = vmatpush1.bf16.xpose.msra.mxu0 0
    %1229 = vmatprep.subr.bf16.mxu0 0
    %1230 = vmatpush1.bf16.xpose.msra.mxu0 0
    %1231 = vmatprep.subr.bf16.mxu0 0
    %1232 = vmatpush1.bf16.xpose.msra.mxu0 0
    %1233 = vmatprep.subr.bf16.mxu0 0
    %1234 = vmatpush1.bf16.xpose.msra.mxu0 %v1217
    %1235 = vmatprep.subr.bf16.mxu0 0
    %1236 = vmatpush2.bf16.xpose.msra.mxu0 0
    %1237 = vmatprep.subr.bf16.mxu0 0
    %1238 = vmatpush2.bf16.xpose.msra.mxu0 0
    %1239 = vmatprep.subr.bf16.mxu0 0
    %1240 = vmatpush2.bf16.xpose.msra.mxu0 0
    %1241 = vmatprep.subr.bf16.mxu0 0
    %1242 = vmatpush2.bf16.xpose.msra.mxu0 0
    %1243 = vmatprep.subr.bf16.mxu0 0
    %1244 = vmatpush2.bf16.xpose.msra.mxu0 0
    %1245 = vmatprep.subr.bf16.mxu0 0
    %1246 = vmatpush2.bf16.xpose.msra.mxu0 0
    %1247 = vmatprep.subr.bf16.mxu0 0
    %1248 = vmatpush2.bf16.xpose.msra.mxu0 0
    %1249 = vmatprep.subr.bf16.mxu0 0
    %1250 = vmatpush2.bf16.xpose.msra.mxu0 0
    %1251 = vmatprep.mubr.bf16.mxu0 0
    %1252 = vmatmul.mubr.bf16.gmra.mxu0 %v1214
    %v1253 = vpop.f32.mrf.mxu0
    %v1254 = vadd.f32 0.0, %v1253
    %v1255 = vpop.f32.mrf.mxu0
    %v1256 = vpop.f32.mrf.mxu0
    %v1257 = vpop.f32.mrf.mxu0
    %1258 = vdwg.mxu0
    %1260 = vrot.lane.b32.xlu0 %v1209, 96
    %v1261 = vpop.permute.xlu0 %1260
    %v1263 = vsel %vm364, %v1209, 0
    %v1266 = vsel %vm364, %v1261, 0
    %1268 = vmatprep.subr.bf16.mxu0 0
    %1269 = vmatpush1.bf16.xpose.msra.mxu0 0
    %1270 = vmatprep.subr.bf16.mxu0 0
    %1271 = vmatpush1.bf16.xpose.msra.mxu0 0
    %1272 = vmatprep.subr.bf16.mxu0 0
    %1273 = vmatpush1.bf16.xpose.msra.mxu0 0
    %1274 = vmatprep.subr.bf16.mxu0 0
    %1275 = vmatpush1.bf16.xpose.msra.mxu0 0
    %1276 = vmatprep.subr.bf16.mxu0 0
    %1277 = vmatpush1.bf16.xpose.msra.mxu0 0
    %1278 = vmatprep.subr.bf16.mxu0 0
    %1279 = vmatpush1.bf16.xpose.msra.mxu0 0
    %1280 = vmatprep.subr.bf16.mxu0 0
    %1281 = vmatpush1.bf16.xpose.msra.mxu0 0
    %1282 = vmatprep.subr.bf16.mxu0 0
    %1283 = vmatpush1.bf16.xpose.msra.mxu0 %v1266
    %1284 = vmatprep.subr.bf16.mxu0 0
    %1285 = vmatpush2.bf16.xpose.msra.mxu0 0
    %1286 = vmatprep.subr.bf16.mxu0 0
    %1287 = vmatpush2.bf16.xpose.msra.mxu0 0
    %1288 = vmatprep.subr.bf16.mxu0 0
    %1289 = vmatpush2.bf16.xpose.msra.mxu0 0
    %1290 = vmatprep.subr.bf16.mxu0 0
    %1291 = vmatpush2.bf16.xpose.msra.mxu0 0
    %1292 = vmatprep.subr.bf16.mxu0 0
    %1293 = vmatpush2.bf16.xpose.msra.mxu0 0
    %1294 = vmatprep.subr.bf16.mxu0 0
    %1295 = vmatpush2.bf16.xpose.msra.mxu0 0
    %1296 = vmatprep.subr.bf16.mxu0 0
    %1297 = vmatpush2.bf16.xpose.msra.mxu0 0
    %1298 = vmatprep.subr.bf16.mxu0 0
    %1299 = vmatpush2.bf16.xpose.msra.mxu0 0
    %1300 = vmatprep.mubr.bf16.mxu0 0
    %1301 = vmatmul.mubr.bf16.gmra.mxu0 %v1263
    %v1302 = vpop.f32.mrf.mxu0
    %v1303 = vadd.f32 0.0, %v1302
    %v1304 = vpop.f32.mrf.mxu0
    %v1305 = vpop.f32.mrf.mxu0
    %v1306 = vpop.f32.mrf.mxu0
    %1307 = vdwg.mxu0
    %v1308 = vmul.f32 %v1254, 0.25
    %v1309 = vmul.f32 %v1303, 0.25
    %v1310 = vadd.f32 %v1308, %v467
    %v1311 = vadd.f32 %v1309, %v471
    %v1312 = vsel %vm476, %v1310, -inf
    %1313 = vmax.xlane.f32.xlu0 %v1312
    %v1314 = vpop.xlane.xlu0 %1313
    %v1315 = vsel %vm476, %v1311, -inf
    %1316 = vmax.xlane.f32.xlu0 %v1315
    %v1317 = vpop.xlane.xlu0 %1316
    %v1318 = vsub.f32 %v1310, %v1314
    %v1319 = vsub.f32 %v1311, %v1317
    %v1320 = vmul.f32 %v1318, 1.442695
    %v1321 = vpow.pop %v1320
    %v1322 = vmul.f32 %v1319, 1.442695
    %v1323 = vpow.pop %v1322
    %v1324 = vsel %vm476, %v1321, 0.0
    %1325 = vadd.xlane.f32.xlu0 %v1324
    %v1326 = vpop.xlane.xlu0 %1325
    %v1327 = vsel %vm476, %v1323, 0.0
    %1328 = vadd.xlane.f32.xlu0 %v1327
    %v1329 = vpop.xlane.xlu0 %1328
    %v1330 = vrcp.pop %v1326
    %v1331 = vrcp.pop %v1329
    %v1332 = vmul.f32 %v1321, %v1330
    %v1333 = vmul.f32 %v1323, %v1331
    %v1334 = vpack.c.bf16 %v1332, %v1332
    %v1335 = vpack.c.bf16 %v1333, %v1333
    %1336 = vrot.lane.b32.xlu0 %v1208, 64
    %v1337 = vpop.permute.xlu0 %1336
    %v1339 = vsel %vm476, %v1334, 0
    %v1342 = vsel %vm506, %v1337, 0
    %1344 = vmatprep.subr.bf16.mxu0 0
    %1345 = vmatpush1.bf16.msra.mxu0 0
    %1346 = vmatprep.subr.bf16.mxu0 0
    %1347 = vmatpush1.bf16.msra.mxu0 0
    %1348 = vmatprep.subr.bf16.mxu0 0
    %1349 = vmatpush1.bf16.msra.mxu0 0
    %1350 = vmatprep.subr.bf16.mxu0 0
    %1351 = vmatpush1.bf16.msra.mxu0 0
    %1352 = vmatprep.subr.bf16.mxu0 0
    %1353 = vmatpush1.bf16.msra.mxu0 0
    %1354 = vmatprep.subr.bf16.mxu0 0
    %1355 = vmatpush1.bf16.msra.mxu0 0
    %1356 = vmatprep.subr.bf16.mxu0 0
    %1357 = vmatpush1.bf16.msra.mxu0 0
    %1358 = vmatprep.subr.bf16.mxu0 0
    %1359 = vmatpush1.bf16.msra.mxu0 %v1342
    %1360 = vmatprep.subr.bf16.mxu0 0
    %1361 = vmatpush2.bf16.msra.mxu0 0
    %1362 = vmatprep.subr.bf16.mxu0 0
    %1363 = vmatpush2.bf16.msra.mxu0 0
    %1364 = vmatprep.subr.bf16.mxu0 0
    %1365 = vmatpush2.bf16.msra.mxu0 0
    %1366 = vmatprep.subr.bf16.mxu0 0
    %1367 = vmatpush2.bf16.msra.mxu0 0
    %1368 = vmatprep.subr.bf16.mxu0 0
    %1369 = vmatpush2.bf16.msra.mxu0 0
    %1370 = vmatprep.subr.bf16.mxu0 0
    %1371 = vmatpush2.bf16.msra.mxu0 0
    %1372 = vmatprep.subr.bf16.mxu0 0
    %1373 = vmatpush2.bf16.msra.mxu0 0
    %1374 = vmatprep.subr.bf16.mxu0 0
    %1375 = vmatpush2.bf16.msra.mxu0 0
    %1376 = vmatprep.mubr.bf16.mxu0 0
    %1377 = vmatmul.mubr.bf16.gmra.mxu0 %v1339
    %v1378 = vpop.f32.mrf.mxu0
    %v1379 = vadd.f32 0.0, %v1378
    %v1380 = vpop.f32.mrf.mxu0
    %v1381 = vpop.f32.mrf.mxu0
    %v1382 = vpop.f32.mrf.mxu0
    %1383 = vdwg.mxu0
    %1384 = vrot.lane.b32.xlu0 %v1209, 64
    %v1385 = vpop.permute.xlu0 %1384
    %v1387 = vsel %vm476, %v1335, 0
    %v1390 = vsel %vm506, %v1385, 0
    %1392 = vmatprep.subr.bf16.mxu0 0
    %1393 = vmatpush1.bf16.msra.mxu0 0
    %1394 = vmatprep.subr.bf16.mxu0 0
    %1395 = vmatpush1.bf16.msra.mxu0 0
    %1396 = vmatprep.subr.bf16.mxu0 0
    %1397 = vmatpush1.bf16.msra.mxu0 0
    %1398 = vmatprep.subr.bf16.mxu0 0
    %1399 = vmatpush1.bf16.msra.mxu0 0
    %1400 = vmatprep.subr.bf16.mxu0 0
    %1401 = vmatpush1.bf16.msra.mxu0 0
    %1402 = vmatprep.subr.bf16.mxu0 0
    %1403 = vmatpush1.bf16.msra.mxu0 0
    %1404 = vmatprep.subr.bf16.mxu0 0
    %1405 = vmatpush1.bf16.msra.mxu0 0
    %1406 = vmatprep.subr.bf16.mxu0 0
    %1407 = vmatpush1.bf16.msra.mxu0 %v1390
    %1408 = vmatprep.subr.bf16.mxu0 0
    %1409 = vmatpush2.bf16.msra.mxu0 0
    %1410 = vmatprep.subr.bf16.mxu0 0
    %1411 = vmatpush2.bf16.msra.mxu0 0
    %1412 = vmatprep.subr.bf16.mxu0 0
    %1413 = vmatpush2.bf16.msra.mxu0 0
    %1414 = vmatprep.subr.bf16.mxu0 0
    %1415 = vmatpush2.bf16.msra.mxu0 0
    %1416 = vmatprep.subr.bf16.mxu0 0
    %1417 = vmatpush2.bf16.msra.mxu0 0
    %1418 = vmatprep.subr.bf16.mxu0 0
    %1419 = vmatpush2.bf16.msra.mxu0 0
    %1420 = vmatprep.subr.bf16.mxu0 0
    %1421 = vmatpush2.bf16.msra.mxu0 0
    %1422 = vmatprep.subr.bf16.mxu0 0
    %1423 = vmatpush2.bf16.msra.mxu0 0
    %1424 = vmatprep.mubr.bf16.mxu0 0
    %1425 = vmatmul.mubr.bf16.gmra.mxu0 %v1387
    %v1426 = vpop.f32.mrf.mxu0
    %v1427 = vadd.f32 0.0, %v1426
    %v1428 = vpop.f32.mrf.mxu0
    %v1429 = vpop.f32.mrf.mxu0
    %v1430 = vpop.f32.mrf.mxu0
    %1431 = vdwg.mxu0
    %1432 = vrot.lane.b32.xlu0 %v1208, 112
    %v1433 = vpop.permute.xlu0 %1432
    %1434 = vrot.lane.b32.xlu0 %v1208, 80
    %v1435 = vpop.permute.xlu0 %1434
    %v1437 = vsel %vm364, %v1433, 0
    %v1440 = vsel %vm364, %v1435, 0
    %1442 = vmatprep.subr.bf16.mxu0 0
    %1443 = vmatpush1.bf16.xpose.msra.mxu0 0
    %1444 = vmatprep.subr.bf16.mxu0 0
    %1445 = vmatpush1.bf16.xpose.msra.mxu0 0
    %1446 = vmatprep.subr.bf16.mxu0 0
    %1447 = vmatpush1.bf16.xpose.msra.mxu0 0
    %1448 = vmatprep.subr.bf16.mxu0 0
    %1449 = vmatpush1.bf16.xpose.msra.mxu0 0
    %1450 = vmatprep.subr.bf16.mxu0 0
    %1451 = vmatpush1.bf16.xpose.msra.mxu0 0
    %1452 = vmatprep.subr.bf16.mxu0 0
    %1453 = vmatpush1.bf16.xpose.msra.mxu0 0
    %1454 = vmatprep.subr.bf16.mxu0 0
    %1455 = vmatpush1.bf16.xpose.msra.mxu0 0
    %1456 = vmatprep.subr.bf16.mxu0 0
    %1457 = vmatpush1.bf16.xpose.msra.mxu0 %v1440
    %1458 = vmatprep.subr.bf16.mxu0 0
    %1459 = vmatpush2.bf16.xpose.msra.mxu0 0
    %1460 = vmatprep.subr.bf16.mxu0 0
    %1461 = vmatpush2.bf16.xpose.msra.mxu0 0
    %1462 = vmatprep.subr.bf16.mxu0 0
    %1463 = vmatpush2.bf16.xpose.msra.mxu0 0
    %1464 = vmatprep.subr.bf16.mxu0 0
    %1465 = vmatpush2.bf16.xpose.msra.mxu0 0
    %1466 = vmatprep.subr.bf16.mxu0 0
    %1467 = vmatpush2.bf16.xpose.msra.mxu0 0
    %1468 = vmatprep.subr.bf16.mxu0 0
    %1469 = vmatpush2.bf16.xpose.msra.mxu0 0
    %1470 = vmatprep.subr.bf16.mxu0 0
    %1471 = vmatpush2.bf16.xpose.msra.mxu0 0
    %1472 = vmatprep.subr.bf16.mxu0 0
    %1473 = vmatpush2.bf16.xpose.msra.mxu0 0
    %1474 = vmatprep.mubr.bf16.mxu0 0
    %1475 = vmatmul.mubr.bf16.gmra.mxu0 %v1437
    %v1476 = vpop.f32.mrf.mxu0
    %v1477 = vadd.f32 0.0, %v1476
    %v1478 = vpop.f32.mrf.mxu0
    %v1479 = vpop.f32.mrf.mxu0
    %v1480 = vpop.f32.mrf.mxu0
    %1481 = vdwg.mxu0
    %1482 = vrot.lane.b32.xlu0 %v1209, 112
    %v1483 = vpop.permute.xlu0 %1482
    %1484 = vrot.lane.b32.xlu0 %v1209, 80
    %v1485 = vpop.permute.xlu0 %1484
    %v1487 = vsel %vm364, %v1483, 0
    %v1490 = vsel %vm364, %v1485, 0
    %1492 = vmatprep.subr.bf16.mxu0 0
    %1493 = vmatpush1.bf16.xpose.msra.mxu0 0
    %1494 = vmatprep.subr.bf16.mxu0 0
    %1495 = vmatpush1.bf16.xpose.msra.mxu0 0
    %1496 = vmatprep.subr.bf16.mxu0 0
    %1497 = vmatpush1.bf16.xpose.msra.mxu0 0
    %1498 = vmatprep.subr.bf16.mxu0 0
    %1499 = vmatpush1.bf16.xpose.msra.mxu0 0
    %1500 = vmatprep.subr.bf16.mxu0 0
    %1501 = vmatpush1.bf16.xpose.msra.mxu0 0
    %1502 = vmatprep.subr.bf16.mxu0 0
    %1503 = vmatpush1.bf16.xpose.msra.mxu0 0
    %1504 = vmatprep.subr.bf16.mxu0 0
    %1505 = vmatpush1.bf16.xpose.msra.mxu0 0
    %1506 = vmatprep.subr.bf16.mxu0 0
    %1507 = vmatpush1.bf16.xpose.msra.mxu0 %v1490
    %1508 = vmatprep.subr.bf16.mxu0 0
    %1509 = vmatpush2.bf16.xpose.msra.mxu0 0
    %1510 = vmatprep.subr.bf16.mxu0 0
    %1511 = vmatpush2.bf16.xpose.msra.mxu0 0
    %1512 = vmatprep.subr.bf16.mxu0 0
    %1513 = vmatpush2.bf16.xpose.msra.mxu0 0
    %1514 = vmatprep.subr.bf16.mxu0 0
    %1515 = vmatpush2.bf16.xpose.msra.mxu0 0
    %1516 = vmatprep.subr.bf16.mxu0 0
    %1517 = vmatpush2.bf16.xpose.msra.mxu0 0
    %1518 = vmatprep.subr.bf16.mxu0 0
    %1519 = vmatpush2.bf16.xpose.msra.mxu0 0
    %1520 = vmatprep.subr.bf16.mxu0 0
    %1521 = vmatpush2.bf16.xpose.msra.mxu0 0
    %1522 = vmatprep.subr.bf16.mxu0 0
    %1523 = vmatpush2.bf16.xpose.msra.mxu0 0
    %1524 = vmatprep.mubr.bf16.mxu0 0
    %1525 = vmatmul.mubr.bf16.gmra.mxu0 %v1487
    %v1526 = vpop.f32.mrf.mxu0
    %v1527 = vadd.f32 0.0, %v1526
    %v1528 = vpop.f32.mrf.mxu0
    %v1529 = vpop.f32.mrf.mxu0
    %v1530 = vpop.f32.mrf.mxu0
    %1531 = vdwg.mxu0
    %v1532 = vmul.f32 %v1477, 0.25
    %v1533 = vmul.f32 %v1527, 0.25
    %v1534 = vadd.f32 %v1532, %v467
    %v1535 = vadd.f32 %v1533, %v471
    %v1536 = vsel %vm476, %v1534, -inf
    %1537 = vmax.xlane.f32.xlu0 %v1536
    %v1538 = vpop.xlane.xlu0 %1537
    %v1539 = vsel %vm476, %v1535, -inf
    %1540 = vmax.xlane.f32.xlu0 %v1539
    %v1541 = vpop.xlane.xlu0 %1540
    %v1542 = vsub.f32 %v1534, %v1538
    %v1543 = vsub.f32 %v1535, %v1541
    %v1544 = vmul.f32 %v1542, 1.442695
    %v1545 = vpow.pop %v1544
    %v1546 = vmul.f32 %v1543, 1.442695
    %v1547 = vpow.pop %v1546
    %v1548 = vsel %vm476, %v1545, 0.0
    %1549 = vadd.xlane.f32.xlu0 %v1548
    %v1550 = vpop.xlane.xlu0 %1549
    %v1551 = vsel %vm476, %v1547, 0.0
    %1552 = vadd.xlane.f32.xlu0 %v1551
    %v1553 = vpop.xlane.xlu0 %1552
    %v1554 = vrcp.pop %v1550
    %v1555 = vrcp.pop %v1553
    %v1556 = vmul.f32 %v1545, %v1554
    %v1557 = vmul.f32 %v1547, %v1555
    %v1558 = vpack.c.bf16 %v1556, %v1556
    %v1559 = vpack.c.bf16 %v1557, %v1557
    %1560 = vrot.lane.b32.xlu0 %v1208, 48
    %v1561 = vpop.permute.xlu0 %1560
    %v1563 = vsel %vm476, %v1558, 0
    %v1566 = vsel %vm506, %v1561, 0
    %1568 = vmatprep.subr.bf16.mxu0 0
    %1569 = vmatpush1.bf16.msra.mxu0 0
    %1570 = vmatprep.subr.bf16.mxu0 0
    %1571 = vmatpush1.bf16.msra.mxu0 0
    %1572 = vmatprep.subr.bf16.mxu0 0
    %1573 = vmatpush1.bf16.msra.mxu0 0
    %1574 = vmatprep.subr.bf16.mxu0 0
    %1575 = vmatpush1.bf16.msra.mxu0 0
    %1576 = vmatprep.subr.bf16.mxu0 0
    %1577 = vmatpush1.bf16.msra.mxu0 0
    %1578 = vmatprep.subr.bf16.mxu0 0
    %1579 = vmatpush1.bf16.msra.mxu0 0
    %1580 = vmatprep.subr.bf16.mxu0 0
    %1581 = vmatpush1.bf16.msra.mxu0 0
    %1582 = vmatprep.subr.bf16.mxu0 0
    %1583 = vmatpush1.bf16.msra.mxu0 %v1566
    %1584 = vmatprep.subr.bf16.mxu0 0
    %1585 = vmatpush2.bf16.msra.mxu0 0
    %1586 = vmatprep.subr.bf16.mxu0 0
    %1587 = vmatpush2.bf16.msra.mxu0 0
    %1588 = vmatprep.subr.bf16.mxu0 0
    %1589 = vmatpush2.bf16.msra.mxu0 0
    %1590 = vmatprep.subr.bf16.mxu0 0
    %1591 = vmatpush2.bf16.msra.mxu0 0
    %1592 = vmatprep.subr.bf16.mxu0 0
    %1593 = vmatpush2.bf16.msra.mxu0 0
    %1594 = vmatprep.subr.bf16.mxu0 0
    %1595 = vmatpush2.bf16.msra.mxu0 0
    %1596 = vmatprep.subr.bf16.mxu0 0
    %1597 = vmatpush2.bf16.msra.mxu0 0
    %1598 = vmatprep.subr.bf16.mxu0 0
    %1599 = vmatpush2.bf16.msra.mxu0 0
    %1600 = vmatprep.mubr.bf16.mxu0 0
    %1601 = vmatmul.mubr.bf16.gmra.mxu0 %v1563
    %v1602 = vpop.f32.mrf.mxu0
    %v1603 = vadd.f32 0.0, %v1602
    %v1604 = vpop.f32.mrf.mxu0
    %v1605 = vpop.f32.mrf.mxu0
    %v1606 = vpop.f32.mrf.mxu0
    %1607 = vdwg.mxu0
    %1608 = vrot.lane.b32.xlu0 %v1209, 48
    %v1609 = vpop.permute.xlu0 %1608
    %v1611 = vsel %vm476, %v1559, 0
    %v1614 = vsel %vm506, %v1609, 0
    %1616 = vmatprep.subr.bf16.mxu0 0
    %1617 = vmatpush1.bf16.msra.mxu0 0
    %1618 = vmatprep.subr.bf16.mxu0 0
    %1619 = vmatpush1.bf16.msra.mxu0 0
    %1620 = vmatprep.subr.bf16.mxu0 0
    %1621 = vmatpush1.bf16.msra.mxu0 0
    %1622 = vmatprep.subr.bf16.mxu0 0
    %1623 = vmatpush1.bf16.msra.mxu0 0
    %1624 = vmatprep.subr.bf16.mxu0 0
    %1625 = vmatpush1.bf16.msra.mxu0 0
    %1626 = vmatprep.subr.bf16.mxu0 0
    %1627 = vmatpush1.bf16.msra.mxu0 0
    %1628 = vmatprep.subr.bf16.mxu0 0
    %1629 = vmatpush1.bf16.msra.mxu0 0
    %1630 = vmatprep.subr.bf16.mxu0 0
    %1631 = vmatpush1.bf16.msra.mxu0 %v1614
    %1632 = vmatprep.subr.bf16.mxu0 0
    %1633 = vmatpush2.bf16.msra.mxu0 0
    %1634 = vmatprep.subr.bf16.mxu0 0
    %1635 = vmatpush2.bf16.msra.mxu0 0
    %1636 = vmatprep.subr.bf16.mxu0 0
    %1637 = vmatpush2.bf16.msra.mxu0 0
    %1638 = vmatprep.subr.bf16.mxu0 0
    %1639 = vmatpush2.bf16.msra.mxu0 0
    %1640 = vmatprep.subr.bf16.mxu0 0
    %1641 = vmatpush2.bf16.msra.mxu0 0
    %1642 = vmatprep.subr.bf16.mxu0 0
    %1643 = vmatpush2.bf16.msra.mxu0 0
    %1644 = vmatprep.subr.bf16.mxu0 0
    %1645 = vmatpush2.bf16.msra.mxu0 0
    %1646 = vmatprep.subr.bf16.mxu0 0
    %1647 = vmatpush2.bf16.msra.mxu0 0
    %1648 = vmatprep.mubr.bf16.mxu0 0
    %1649 = vmatmul.mubr.bf16.gmra.mxu0 %v1611
    %v1650 = vpop.f32.mrf.mxu0
    %v1651 = vadd.f32 0.0, %v1650
    %v1652 = vpop.f32.mrf.mxu0
    %v1653 = vpop.f32.mrf.mxu0
    %v1654 = vpop.f32.mrf.mxu0
    %1655 = vdwg.mxu0
    %1658 = vrot.lane.b32.xlu0 %v1603, 16
    %v1659 = vpop.permute.xlu0 %1658
    %1660 = vrot.lane.b32.xlu0 %v1651, 16
    %v1661 = vpop.permute.xlu0 %1660
    %v1664 = vsel %vm364, %v1379, %v1659
    %v1665 = vsel %vm364, %v1427, %v1661
    %v1666 = vpack.c.bf16 %v1665, %v1664
    %v1667 = vlaneseq
    %v1668 = vshrl.u32 %v1667, 7
    %v1669 = vsub.s32 0, %v1668
    %v1670 = vrot.slane %v1140, %v1669
    %1671 = vrot.lane.b32.xlu0 %v1160, 32
    %v1672 = vpop.permute.xlu0 %1671
    %1673 = vrot.lane.b32.xlu0 %v1161, 32
    %v1674 = vpop.permute.xlu0 %1673
    %v1678 = vsel %vm228, %v1666, 0
    %1680 = vmatprep.subr.bf16.mxu0 0
    %1681 = vmatpush1.bf16.msra.mxu0 0
    %1682 = vmatprep.subr.bf16.mxu0 0
    %1683 = vmatpush1.bf16.msra.mxu0 0
    %1684 = vmatprep.subr.bf16.mxu0 0
    %1685 = vmatpush1.bf16.msra.mxu0 0
    %1686 = vmatprep.subr.bf16.mxu0 0
    %1687 = vmatpush1.bf16.msra.mxu0 0
    %1688 = vmatprep.subr.bf16.mxu0 0
    %1689 = vmatpush1.bf16.msra.mxu0 0
    %1690 = vmatprep.subr.bf16.mxu0 0
    %1691 = vmatpush1.bf16.msra.mxu0 0
    %1692 = vmatprep.subr.bf16.mxu0 0
    %1693 = vmatpush1.bf16.msra.mxu0 %v1674
    %1694 = vmatprep.subr.bf16.mxu0 0
    %1695 = vmatpush1.bf16.msra.mxu0 %v1672
    %1696 = vmatprep.subr.bf16.mxu0 0
    %1697 = vmatpush2.bf16.msra.mxu0 0
    %1698 = vmatprep.subr.bf16.mxu0 0
    %1699 = vmatpush2.bf16.msra.mxu0 0
    %1700 = vmatprep.subr.bf16.mxu0 0
    %1701 = vmatpush2.bf16.msra.mxu0 0
    %1702 = vmatprep.subr.bf16.mxu0 0
    %1703 = vmatpush2.bf16.msra.mxu0 0
    %1704 = vmatprep.subr.bf16.mxu0 0
    %1705 = vmatpush2.bf16.msra.mxu0 0
    %1706 = vmatprep.subr.bf16.mxu0 0
    %1707 = vmatpush2.bf16.msra.mxu0 0
    %1708 = vmatprep.subr.bf16.mxu0 0
    %1709 = vmatpush2.bf16.msra.mxu0 0
    %1710 = vmatprep.subr.bf16.mxu0 0
    %1711 = vmatpush2.bf16.msra.mxu0 0
    %1712 = vmatprep.mubr.bf16.mxu0 0
    %1713 = vmatmul.mubr.bf16.gmra.mxu0 %v1678
    %v1714 = vpop.f32.mrf.mxu0
    %v1715 = vadd.f32 %v1670, %v1714
    %v1716 = vpop.f32.mrf.mxu0
    %v1717 = vpop.f32.mrf.mxu0
    %v1718 = vadd.f32 %v1670, %v1717
    %v1719 = vpop.f32.mrf.mxu0
    %1720 = vdwg.mxu0
    %v1721 = vadd.f32 %v1118, %v1715
    %v1722 = vadd.f32 %v1119, %v1718
    %v1723 = vsel %vm228, %v1721, 0.0
    %1724 = vadd.xlane.f32.xlu0 %v1723
    %v1725 = vpop.xlane.xlu0 %1724
    %v1726 = vsel %vm228, %v1722, 0.0
    %1727 = vadd.xlane.f32.xlu0 %v1726
    %v1728 = vpop.xlane.xlu0 %1727
    %v1729 = vmul.f32 %v1725, %v235
    %v1730 = vmul.f32 %v1728, %v235
    %v1731 = vsub.f32 %v1721, %v1729
    %v1732 = vsub.f32 %v1722, %v1730
    %v1733 = vmul.f32 %v1731, %v1731
    %v1734 = vmul.f32 %v1732, %v1732
    %v1735 = vsel %vm228, %v1733, 0.0
    %1736 = vadd.xlane.f32.xlu0 %v1735
    %v1737 = vpop.xlane.xlu0 %1736
    %v1738 = vsel %vm228, %v1734, 0.0
    %1739 = vadd.xlane.f32.xlu0 %v1738
    %v1740 = vpop.xlane.xlu0 %1739
    %v1741 = vmul.f32 %v1737, %v235
    %v1742 = vmul.f32 %v1740, %v235
    %v1743 = vadd.f32 %v1741, 1e-05
    %v1744 = vadd.f32 %v1742, 1e-05
    %v1745 = vrsqrt.pop %v1743
    %v1746 = vrsqrt.pop %v1744
    %v1747 = vmul.f32 %v1731, %v1745
    %v1748 = vmul.f32 %v1732, %v1746
    %v1749 = vlaneseq
    %v1750 = vshrl.u32 %v1749, 7
    %v1751 = vsub.s32 0, %v1750
    %v1752 = vrot.slane %v1141, %v1751
    %v1753 = vmul.f32 %v1747, %v1752
    %v1754 = vmul.f32 %v1748, %v1752
    %v1755 = vlaneseq
    %v1756 = vshrl.u32 %v1755, 7
    %v1757 = vsub.s32 0, %v1756
    %v1758 = vrot.slane %v1142, %v1757
    %v1759 = vadd.f32 %v1753, %v1758
    %v1760 = vadd.f32 %v1754, %v1758
    %v1761 = vpack.c.bf16 %v1760, %v1759
    %v1762 = vlaneseq
    %v1763 = vshrl.u32 %v1762, 7
    %v1764 = vsub.s32 0, %v1763
    %v1765 = vrot.slane %v1143, %v1764
    %v1770 = vunpack.c.l.b16 %v1125
    %v1771 = vunpack.c.l.b16 %v1126
    %v1772 = vunpack.c.l.b16 %v1127
    %v1773 = vunpack.c.l.b16 %v1128
    %v1774 = vpack.c.b16 %v1771, %v1770
    %v1775 = vpack.c.b16 %v1773, %v1772
    %v1779 = vsel %vm228, %v1761, 0
    %1781 = vmatprep.subr.bf16.mxu0 0
    %1782 = vmatpush1.bf16.msra.mxu0 0
    %1783 = vmatprep.subr.bf16.mxu0 0
    %1784 = vmatpush1.bf16.msra.mxu0 0
    %1785 = vmatprep.subr.bf16.mxu0 0
    %1786 = vmatpush1.bf16.msra.mxu0 0
    %1787 = vmatprep.subr.bf16.mxu0 0
    %1788 = vmatpush1.bf16.msra.mxu0 0
    %1789 = vmatprep.subr.bf16.mxu0 0
    %1790 = vmatpush1.bf16.msra.mxu0 0
    %1791 = vmatprep.subr.bf16.mxu0 0
    %1792 = vmatpush1.bf16.msra.mxu0 0
    %1793 = vmatprep.subr.bf16.mxu0 0
    %1794 = vmatpush1.bf16.msra.mxu0 %v1775
    %1795 = vmatprep.subr.bf16.mxu0 0
    %1796 = vmatpush1.bf16.msra.mxu0 %v1774
    %1797 = vmatprep.subr.bf16.mxu0 0
    %1798 = vmatpush2.bf16.msra.mxu0 0
    %1799 = vmatprep.subr.bf16.mxu0 0
    %1800 = vmatpush2.bf16.msra.mxu0 0
    %1801 = vmatprep.subr.bf16.mxu0 0
    %1802 = vmatpush2.bf16.msra.mxu0 0
    %1803 = vmatprep.subr.bf16.mxu0 0
    %1804 = vmatpush2.bf16.msra.mxu0 0
    %1805 = vmatprep.subr.bf16.mxu0 0
    %1806 = vmatpush2.bf16.msra.mxu0 0
    %1807 = vmatprep.subr.bf16.mxu0 0
    %1808 = vmatpush2.bf16.msra.mxu0 0
    %1809 = vmatprep.subr.bf16.mxu0 0
    %1810 = vmatpush2.bf16.msra.mxu0 0
    %1811 = vmatprep.subr.bf16.mxu0 0
    %1812 = vmatpush2.bf16.msra.mxu0 0
    %1813 = vmatprep.mubr.bf16.mxu0 0
    %1814 = vmatmul.mubr.bf16.gmra.mxu0 %v1779
    %v1815 = vpop.f32.mrf.mxu0
    %v1816 = vadd.f32 %v1765, %v1815
    %v1817 = vpop.f32.mrf.mxu0
    %v1818 = vpop.f32.mrf.mxu0
    %v1819 = vadd.f32 %v1765, %v1818
    %v1820 = vpop.f32.mrf.mxu0
    %1821 = vdwg.mxu0
    %v1822 = vmul.f32 %v1816, 0.5
    %v1823 = vmul.f32 %v1819, 0.5
    %v1824 = vmul.f32 %v1816, 0.044715
    %v1825 = vmul.f32 %v1819, 0.044715
    %v1826 = vmul.f32 %v1824, %v1816
    %v1827 = vmul.f32 %v1825, %v1819
    %v1828 = vmul.f32 %v1826, %v1816
    %v1829 = vmul.f32 %v1827, %v1819
    %v1830 = vadd.f32 %v1816, %v1828
    %v1831 = vadd.f32 %v1819, %v1829
    %v1832 = vmul.f32 %v1830, 0.7978846
    %v1833 = vmul.f32 %v1831, 0.7978846
    %v1834 = vtanh.pop %v1832
    %v1835 = vtanh.pop %v1833
    %v1836 = vadd.f32 %v1834, 1.0
    %v1837 = vadd.f32 %v1835, 1.0
    %v1838 = vmul.f32 %v1822, %v1836
    %v1839 = vmul.f32 %v1823, %v1837
    %v1840 = vpack.c.bf16 %v1839, %v1838
    %v1841 = vlaneseq
    %v1842 = vshrl.u32 %v1841, 7
    %v1843 = vsub.s32 0, %v1842
    %v1844 = vrot.slane %v1144, %v1843
    %v1853 = vunpack.c.l.b16 %v1130
    %v1854 = vunpack.c.l.b16 %v1131
    %v1855 = vunpack.c.l.b16 %v1132
    %v1856 = vunpack.c.l.b16 %v1133
    %v1857 = vunpack.c.l.b16 %v1134
    %v1858 = vunpack.c.l.b16 %v1135
    %v1859 = vunpack.c.l.b16 %v1136
    %v1860 = vunpack.c.l.b16 %v1137
    %v1861 = vpack.c.b16 %v1854, %v1853
    %v1862 = vpack.c.b16 %v1856, %v1855
    %v1863 = vpack.c.b16 %v1858, %v1857
    %v1864 = vpack.c.b16 %v1860, %v1859
    %v1870 = vsel %vm1035, %v1840, 0
    %1872 = vmatprep.subr.bf16.mxu0 0
    %1873 = vmatpush1.bf16.msra.mxu0 0
    %1874 = vmatprep.subr.bf16.mxu0 0
    %1875 = vmatpush1.bf16.msra.mxu0 0
    %1876 = vmatprep.subr.bf16.mxu0 0
    %1877 = vmatpush1.bf16.msra.mxu0 0
    %1878 = vmatprep.subr.bf16.mxu0 0
    %1879 = vmatpush1.bf16.msra.mxu0 0
    %1880 = vmatprep.subr.bf16.mxu0 0
    %1881 = vmatpush1.bf16.msra.mxu0 %v1864
    %1882 = vmatprep.subr.bf16.mxu0 0
    %1883 = vmatpush1.bf16.msra.mxu0 %v1863
    %1884 = vmatprep.subr.bf16.mxu0 0
    %1885 = vmatpush1.bf16.msra.mxu0 %v1862
    %1886 = vmatprep.subr.bf16.mxu0 0
    %1887 = vmatpush1.bf16.msra.mxu0 %v1861
    %1888 = vmatprep.subr.bf16.mxu0 0
    %1889 = vmatpush2.bf16.msra.mxu0 0
    %1890 = vmatprep.subr.bf16.mxu0 0
    %1891 = vmatpush2.bf16.msra.mxu0 0
    %1892 = vmatprep.subr.bf16.mxu0 0
    %1893 = vmatpush2.bf16.msra.mxu0 0
    %1894 = vmatprep.subr.bf16.mxu0 0
    %1895 = vmatpush2.bf16.msra.mxu0 0
    %1896 = vmatprep.subr.bf16.mxu0 0
    %1897 = vmatpush2.bf16.msra.mxu0 0
    %1898 = vmatprep.subr.bf16.mxu0 0
    %1899 = vmatpush2.bf16.msra.mxu0 0
    %1900 = vmatprep.subr.bf16.mxu0 0
    %1901 = vmatpush2.bf16.msra.mxu0 0
    %1902 = vmatprep.subr.bf16.mxu0 0
    %1903 = vmatpush2.bf16.msra.mxu0 0
    %1904 = vmatprep.mubr.bf16.mxu0 0
    %1905 = vmatmul.mubr.bf16.gmra.mxu0 %v1870
    %v1906 = vpop.f32.mrf.mxu0
    %v1907 = vadd.f32 %v1844, %v1906
    %v1908 = vpop.f32.mrf.mxu0
    %v1909 = vpop.f32.mrf.mxu0
    %v1910 = vadd.f32 %v1844, %v1909
    %v1911 = vpop.f32.mrf.mxu0
    %1912 = vdwg.mxu0
    %v1913 = vadd.f32 %v1759, %v1907
    %v1914 = vadd.f32 %v1760, %v1910
    %v1915 = vsel %vm228, %v1913, 0.0
    %1916 = vadd.xlane.f32.xlu0 %v1915
    %v1917 = vpop.xlane.xlu0 %1916
    %v1918 = vsel %vm228, %v1914, 0.0
    %1919 = vadd.xlane.f32.xlu0 %v1918
    %v1920 = vpop.xlane.xlu0 %1919
    %v1921 = vmul.f32 %v1917, %v235
    %v1922 = vmul.f32 %v1920, %v235
    %v1923 = vsub.f32 %v1913, %v1921
    %v1924 = vsub.f32 %v1914, %v1922
    %v1925 = vmul.f32 %v1923, %v1923
    %v1926 = vmul.f32 %v1924, %v1924
    %v1927 = vsel %vm228, %v1925, 0.0
    %1928 = vadd.xlane.f32.xlu0 %v1927
    %v1929 = vpop.xlane.xlu0 %1928
    %v1930 = vsel %vm228, %v1926, 0.0
    %1931 = vadd.xlane.f32.xlu0 %v1930
    %v1932 = vpop.xlane.xlu0 %1931
    %v1933 = vmul.f32 %v1929, %v235
    %v1934 = vmul.f32 %v1932, %v235
    %v1935 = vadd.f32 %v1933, 1e-05
    %v1936 = vadd.f32 %v1934, 1e-05
    %v1937 = vrsqrt.pop %v1935
    %v1938 = vrsqrt.pop %v1936
    %v1939 = vmul.f32 %v1923, %v1937
    %v1940 = vmul.f32 %v1924, %v1938
    %v1941 = vlaneseq
    %v1942 = vshrl.u32 %v1941, 7
    %v1943 = vsub.s32 0, %v1942
    %v1944 = vrot.slane %v1145, %v1943
    %v1945 = vmul.f32 %v1939, %v1944
    %v1946 = vmul.f32 %v1940, %v1944
    %v1947 = vlaneseq
    %v1948 = vshrl.u32 %v1947, 7
    %v1949 = vsub.s32 0, %v1948
    %v1950 = vrot.slane %v1146, %v1949
    %v1951 = vadd.f32 %v1945, %v1950
    %v1952 = vadd.f32 %v1946, %v1950
    %v1953 = vld [vmem:[%s6 + $0x4] sm:$0xf]
    %v1954 = vld [vmem:[%s6 + $0xc] sm:$0xf]
    %v1955 = vld [vmem:[%s6 + $0x14] sm:$0xf]
    %v1956 = vld [vmem:[%s6 + $0x1c] sm:$0xf]
    %v1957 = vpack.c.bf16 %v1951, %v1951
    %v1958 = vpack.c.bf16 %v1952, %v1952
    %v1959 = vld [vmem:[%s7 + $0x2] sm:$0x1]
    %v1960 = vlaneseq
    %v1961 = vshrl.u32 %v1960, 7
    %v1962 = vsub.s32 0, %v1961
    %v1963 = vrot.slane %v1959, %v1962
    %v1966 = vunpack.c.l.b16 %v1957
    %v1967 = vunpack.c.l.b16 %v1958
    %v1968 = vrot.slane %v1967, 7
    %vm1969 = vcmask 1041409
    %v1970 = vsel %vm1969, %v1968, %v1966
    %v1971 = vpack.c.b16 %v1970, %v1970
    %v1976 = vunpack.c.l.b16 %v1953
    %v1977 = vunpack.c.l.b16 %v1954
    %v1978 = vunpack.c.l.b16 %v1955
    %v1979 = vunpack.c.l.b16 %v1956
    %v1980 = vpack.c.b16 %v1977, %v1976
    %v1981 = vpack.c.b16 %v1979, %v1978
    %v1985 = vsel %vm228, %v1971, 0
    %1987 = vmatprep.subr.bf16.mxu0 0
    %1988 = vmatpush1.bf16.msra.mxu0 0
    %1989 = vmatprep.subr.bf16.mxu0 0
    %1990 = vmatpush1.bf16.msra.mxu0 0
    %1991 = vmatprep.subr.bf16.mxu0 0
    %1992 = vmatpush1.bf16.msra.mxu0 0
    %1993 = vmatprep.subr.bf16.mxu0 0
    %1994 = vmatpush1.bf16.msra.mxu0 0
    %1995 = vmatprep.subr.bf16.mxu0 0
    %1996 = vmatpush1.bf16.msra.mxu0 0
    %1997 = vmatprep.subr.bf16.mxu0 0
    %1998 = vmatpush1.bf16.msra.mxu0 0
    %1999 = vmatprep.subr.bf16.mxu0 0
    %2000 = vmatpush1.bf16.msra.mxu0 %v1981
    %2001 = vmatprep.subr.bf16.mxu0 0
    %2002 = vmatpush1.bf16.msra.mxu0 %v1980
    %2003 = vmatprep.subr.bf16.mxu0 0
    %2004 = vmatpush2.bf16.msra.mxu0 0
    %2005 = vmatprep.subr.bf16.mxu0 0
    %2006 = vmatpush2.bf16.msra.mxu0 0
    %2007 = vmatprep.subr.bf16.mxu0 0
    %2008 = vmatpush2.bf16.msra.mxu0 0
    %2009 = vmatprep.subr.bf16.mxu0 0
    %2010 = vmatpush2.bf16.msra.mxu0 0
    %2011 = vmatprep.subr.bf16.mxu0 0
    %2012 = vmatpush2.bf16.msra.mxu0 0
    %2013 = vmatprep.subr.bf16.mxu0 0
    %2014 = vmatpush2.bf16.msra.mxu0 0
    %2015 = vmatprep.subr.bf16.mxu0 0
    %2016 = vmatpush2.bf16.msra.mxu0 0
    %2017 = vmatprep.subr.bf16.mxu0 0
    %2018 = vmatpush2.bf16.msra.mxu0 0
    %2019 = vmatprep.mubr.bf16.mxu0 0
    %2020 = vmatmul.mubr.bf16.gmra.mxu0 %v1985
    %v2021 = vpop.f32.mrf.mxu0
    %v2022 = vadd.f32 %v1963, %v2021
    %v2023 = vpop.f32.mrf.mxu0
    %v2024 = vpop.f32.mrf.mxu0
    %v2025 = vpop.f32.mrf.mxu0
    %2026 = vdwg.mxu0
    %v2027 = vtanh.pop %v2022
    %v2028 = vld [vmem:[%s6] sm:$0xf]
    %v2029 = vld [vmem:[%s6 + $0x8] sm:$0xf]
    %v2030 = vld [vmem:[%s6 + $0x10] sm:$0xf]
    %v2031 = vld [vmem:[%s6 + $0x18] sm:$0xf]
    %v2032 = vpack.c.bf16 %v2027, %v2027
    %v2033 = vld [vmem:[%s7 + $0x3] sm:$0x1]
    %v2034 = vlaneseq
    %v2035 = vshrl.u32 %v2034, 7
    %v2036 = vsub.s32 0, %v2035
    %v2037 = vrot.slane %v2033, %v2036
    %v2042 = vunpack.c.l.b16 %v2028
    %v2043 = vunpack.c.l.b16 %v2029
    %v2044 = vunpack.c.l.b16 %v2030
    %v2045 = vunpack.c.l.b16 %v2031
    %v2046 = vpack.c.b16 %v2043, %v2042
    %v2047 = vpack.c.b16 %v2045, %v2044
    %v2051 = vsel %vm228, %v2032, 0
    %2053 = vmatprep.subr.bf16.mxu0 0
    %2054 = vmatpush1.bf16.msra.mxu0 0
    %2055 = vmatprep.subr.bf16.mxu0 0
    %2056 = vmatpush1.bf16.msra.mxu0 0
    %2057 = vmatprep.subr.bf16.mxu0 0
    %2058 = vmatpush1.bf16.msra.mxu0 0
    %2059 = vmatprep.subr.bf16.mxu0 0
    %2060 = vmatpush1.bf16.msra.mxu0 0
    %2061 = vmatprep.subr.bf16.mxu0 0
    %2062 = vmatpush1.bf16.msra.mxu0 0
    %2063 = vmatprep.subr.bf16.mxu0 0
    %2064 = vmatpush1.bf16.msra.mxu0 0
    %2065 = vmatprep.subr.bf16.mxu0 0
    %2066 = vmatpush1.bf16.msra.mxu0 %v2047
    %2067 = vmatprep.subr.bf16.mxu0 0
    %2068 = vmatpush1.bf16.msra.mxu0 %v2046
    %2069 = vmatprep.subr.bf16.mxu0 0
    %2070 = vmatpush2.bf16.msra.mxu0 0
    %2071 = vmatprep.subr.bf16.mxu0 0
    %2072 = vmatpush2.bf16.msra.mxu0 0
    %2073 = vmatprep.subr.bf16.mxu0 0
    %2074 = vmatpush2.bf16.msra.mxu0 0
    %2075 = vmatprep.subr.bf16.mxu0 0
    %2076 = vmatpush2.bf16.msra.mxu0 0
    %2077 = vmatprep.subr.bf16.mxu0 0
    %2078 = vmatpush2.bf16.msra.mxu0 0
    %2079 = vmatprep.subr.bf16.mxu0 0
    %2080 = vmatpush2.bf16.msra.mxu0 0
    %2081 = vmatprep.subr.bf16.mxu0 0
    %2082 = vmatpush2.bf16.msra.mxu0 0
    %2083 = vmatprep.subr.bf16.mxu0 0
    %2084 = vmatpush2.bf16.msra.mxu0 0
    %2085 = vmatprep.mubr.bf16.mxu0 0
    %2086 = vmatmul.mubr.bf16.gmra.mxu0 %v2051
    %v2087 = vpop.f32.mrf.mxu0
    %v2088 = vadd.f32 %v2037, %v2087
    %v2089 = vpop.f32.mrf.mxu0
    %v2090 = vpop.f32.mrf.mxu0
    %v2091 = vpop.f32.mrf.mxu0
    %2092 = vdwg.mxu0
    %2093 = vst [vmem:[#allocation2] sm:$0x3] %v2088
    // Predicated region
    $region34: #{phobert_classifier_forward.1} parent=1 // pred_check
      _
    $region35: #{phobert_classifier_forward.1} parent=1 // pred_check_branch
      %2095 = sbr.rel (0) target = $region37
    $region36: #{phobert_classifier_forward.1} parent=1 // pred_region
      %s2097 = ssub.s32 32, 32
      %2098 = vsyncadd [#allocation3], %s2097
      %s2100 = sshll.u32 [#allocation2], 4
      %s2101 = int_to_ptr.vmem [resolvable:$true] %s2100
      %2103 = dma.vmem_to_hbm [thread:$0]  %s2101, 32, %s8, [#allocation3]
    $region37: #{phobert_classifier_forward.1} parent=1 // pred_fallthru
      _
    // Predicated region
    $region38: #{phobert_classifier_forward.1} parent=1 // pred_check
      _
    $region39: #{phobert_classifier_forward.1} parent=1 // pred_check_branch
      %2105 = sbr.rel (0) target = $region41
    $region40: #{phobert_classifier_forward.1} parent=1 // pred_region
      %2106 = dma.done [#allocation3], 32
    $region41: #{phobert_classifier_forward.1} parent=1 // pred_fallthru
      _
    %2107 = vsyncpa [#allocation3], 1

</llo_original>
